<compile_context>
chip_gen: v5e
topology: v5e:2x2
jax: 0.10.0
libtpu: 0.0.40
codegen_flags: <defaults>
</compile_context>

<pallas_src>
import jax
import jax.numpy as jnp
from jax import lax
from jax.experimental import pallas as pl
from jax.experimental.pallas import tpu as pltpu


def _round_up(x, m):
    return ((x + m - 1) // m) * m


def _tile_vmem_bytes(rows, cols, itemsize):
    """Approx VMEM footprint of a (rows, cols) block under (8, 128) tiling."""
    return _round_up(max(rows, 1), 8) * _round_up(max(cols, 1), 128) * itemsize


def _vmem_budget_bytes():
    """~75% of this chip's VMEM (128 MiB v5e/v6e, 64 MiB v7x) minus headroom.

    The per-tile `need` formulas below already include the x2 double-buffer
    factor, so no extra conservatism here.
    """
    cap = 64 << 20                       # conservative fallback: v7x per-core
    try:
        info = pltpu.get_tpu_info()
        cap = int(getattr(info, "vmem_capacity_bytes", cap) or cap)
    except Exception:
        pass
    return max(int(0.75 * cap) - (8 << 20), 24 << 20)


# ----------------------------------------------------------------------------
# Kernel 1 (default, stride=1): fused im2col + matmul, per-batch grid step.
#   out_full[oh*W + ow, :] = sum_{kh,kw} x_flat[(oh*W + ow) + kh*W + kw, :] @ W_k
# Columns ow >= OW wrap into the next image row and are discarded host-side.
# ----------------------------------------------------------------------------
def _make_fused_kernel(offsets, m_rows):
    def kernel(x_ref, w_ref, b_ref, o_ref):
        # x_ref: (H*W + K - 1, C)   w_ref: (K*K, C, tn)
        # b_ref: (1, tn) f32        o_ref: (m_rows, tn) f32
        acc = jnp.zeros(o_ref.shape, jnp.float32)
        for k, off in enumerate(offsets):          # K*K static, unrolled
            xs = x_ref[pl.ds(off, m_rows), :]      # contiguous shifted slice
            acc += jnp.dot(xs, w_ref[k], preferred_element_type=jnp.float32)
        o_ref[...] = (acc + b_ref[...]).astype(o_ref.dtype)
    return kernel


# ----------------------------------------------------------------------------
# Kernel 2 (fallback): tiled matmul with K grid axis + f32 accumulator.
# Bias is folded into the weight matrix (ones column in the padded Kdim).
# ----------------------------------------------------------------------------
def _matmul_bias_folded_kernel(p_ref, w_ref, o_ref, acc_ref):
    k = pl.program_id(2)

    @pl.when(k == 0)
    def _():
        acc_ref[...] = jnp.zeros_like(acc_ref)

    acc_ref[...] += jnp.dot(p_ref[...], w_ref[...],
                            preferred_element_type=jnp.float32)

    @pl.when(k == pl.num_programs(2) - 1)
    def _():
        o_ref[...] = acc_ref[...].astype(o_ref.dtype)


class MyConv2dPallas:
    """Pallas TPU equivalent of the PyTorch MyConv2d module (forward only).

    use_bf16=True (recommended on v6e/v7x) halves HBM traffic for this
    memory-bound op; accumulation, bias add and output stay f32.
    channels_last=True returns NHWC and skips the output transpose pass.
    """

    def __init__(self, in_channels, out_channels, kernel_size, stride=1,
                 padding=0, *, key=None, use_bf16=False, channels_last=False):
        self.in_channels = in_channels
        self.out_channels = out_channels
        self.kernel_size = kernel_size
        self.stride = stride
        self.padding = padding
        self.use_bf16 = use_bf16
        self.channels_last = channels_last
        self._in_dtype = jnp.bfloat16 if use_bf16 else jnp.float32

        if key is None:
            key = jax.random.PRNGKey(0)
        k_w, k_b = jax.random.split(key)
        # torch.randn-style init, OIHW weight layout like the PyTorch module.
        self.weight = jax.random.normal(
            k_w, (out_channels, in_channels, kernel_size, kernel_size),
            dtype=jnp.float32)
        self.bias = jax.random.normal(k_b, (out_channels,), dtype=jnp.float32)

        K, C, OC = kernel_size, in_channels, out_channels
        KK = K * K
        Kdim = C * KK
        self._Kdim = Kdim
        self._ocp = OCp = _round_up(OC, 128)   # lane-dense output stores
        self._tn = 128                         # natural MXU width (v5e) and
                                               # frees VMEM for larger tm

        # ---- fused-path operands (hoisted once) ----------------------------
        # (OC, C, K, K) -> (K, K, C, OC) -> (K*K, C, OCp); index k = kh*K + kw.
        w_s = jnp.transpose(self.weight, (2, 3, 1, 0)).reshape(KK, C, OC)
        self._w_stack = (jnp.zeros((KK, C, OCp), self._in_dtype)
                         .at[:, :, :OC].set(w_s.astype(self._in_dtype)))
        self._b_row = (jnp.zeros((1, OCp), jnp.float32)
                       .at[0, :OC].set(self.bias))

        # ---- im2col fallback operands (hoisted once) ------------------------
        # Kdim padded to a multiple of 128; the first padded row carries the
        # bias, matched by a ones column in the patches (no bias stream).
        # tk: largest of (2048..128) whose padding waste stays small.
        min_kp = _round_up(Kdim + 1, 128)
        tk = 128
        for cand in (2048, 1024, 512, 256, 128):
            if _round_up(Kdim + 1, cand) <= max(min_kp * 9 // 8, 128):
                tk = cand
                break
        self._tk = tk
        self._kdim_p = _round_up(Kdim + 1, tk)
        w_mat = self.weight.reshape(OC, Kdim).T      # (c, kh, kw) ordering —
        # matches lax.conv_general_dilated_patches' feature ordering.
        w_pad = jnp.zeros((self._kdim_p, OCp), jnp.float32)
        w_pad = w_pad.at[:Kdim, :OC].set(w_mat)
        w_pad = w_pad.at[Kdim, :OC].set(self.bias)   # folded bias row
        self._w_mat = w_pad.astype(self._in_dtype)

        self._forward = jax.jit(self._forward_impl)

    # -------------------------------------------------------------------- #
    def __call__(self, x):
        return self._forward(x)

    def _forward_impl(self, x):
        B, C, H, W = x.shape
        K, s = self.kernel_size, self.stride
        # The PyTorch reference uses `padding` only in the output-size formula
        # and never pads x (its padding>0 path is shape-inconsistent); here we
        # apply standard zero padding so the formula stays consistent.
        # TODO(synk): the reference's padding>0 behavior itself is not reproducible.
        if self.padding > 0:
            p = self.padding
            x = jnp.pad(x, ((0, 0), (0, 0), (p, p), (p, p)))
            H, W = H + 2 * p, W + 2 * p
        OH = (H - K) // s + 1
        OW = (W - K) // s + 1

        x_nhwc = jnp.transpose(x, (0, 2, 3, 1)).astype(self._in_dtype)
        budget = _vmem_budget_bytes()

        if s == 1 and self._fused_fits(H, W, C, OH, budget):
            out_nhwc = self._fused_conv(x_nhwc, H, W, OH, OW, budget)
        else:
            out_nhwc = self._im2col_conv(x_nhwc, B, OH, OW, budget)

        if self.channels_last:
            return out_nhwc                       # skip the extra HBM pass
        return jnp.transpose(out_nhwc, (0, 3, 1, 2))

    # -------------------------------------------------------------------- #
    def _fused_fits(self, H, W, C, OH, budget):
        in_b = 2 if self.use_bf16 else 4
        K, tn = self.kernel_size, self._tn
        m_rows, hw_p = OH * W, H * W + K - 1
        need = 2 * (_tile_vmem_bytes(hw_p, C, in_b)
                    + K * K * _tile_vmem_bytes(C, tn, in_b)
                    + _tile_vmem_bytes(1, tn, 4)
                    + _tile_vmem_bytes(m_rows, tn, 4)) \
               + _tile_vmem_bytes(m_rows, tn, 4)       # f32 accumulator
        return need <= budget

    def _fused_conv(self, x_nhwc, H, W, OH, OW, budget):
        B = x_nhwc.shape[0]
        C, K = self.in_channels, self.kernel_size
        OC, OCp, tn = self.out_channels, self._ocp, self._tn
        m_rows = OH * W
        hw_p = H * W + K - 1            # K-1 zero slack rows keep every
                                        # shifted slice in bounds
        x_flat = jnp.pad(x_nhwc.reshape(B, H * W, C),
                         ((0, 0), (0, K - 1), (0, 0)))

        offsets = tuple(kh * W + kw for kh in range(K) for kw in range(K))
        kernel = _make_fused_kernel(offsets, m_rows)

        in_b = 2 if self.use_bf16 else 4
        grid = (B, OCp // tn)
        cost = pl.CostEstimate(
            flops=2 * B * m_rows * K * K * C * OCp,
            transcendentals=0,
            bytes_accessed=int(B * hw_p * C * in_b          # x: once per batch
                               + B * K * K * C * OCp * in_b  # weights per (b,j)
                               + B * OCp * 4                 # bias
                               + B * m_rows * OCp * 4))      # output write

        out_full = pl.pallas_call(
            kernel,
            out_shape=jax.ShapeDtypeStruct((B, m_rows, OCp), jnp.float32),
            grid_spec=pltpu.PrefetchScalarGridSpec(
                num_scalar_prefetch=0,
                grid=grid,
                in_specs=[
                    # whole flattened image: depends only on b, so it stays
                    # VMEM-resident across the OC sweep (no re-DMA)
                    pl.BlockSpec((None, hw_p, C), lambda b, j: (b, 0, 0)),
                    pl.BlockSpec((K * K, C, tn), lambda b, j: (0, 0, j)),
                    pl.BlockSpec((1, tn), lambda b, j: (0, j)),
                ],
                out_specs=pl.BlockSpec((None, m_rows, tn),
                                       lambda b, j: (b, 0, j)),
            ),
            compiler_params=pltpu.CompilerParams(
                dimension_semantics=("parallel", "parallel"),
                vmem_limit_bytes=int(budget + (8 << 20))),
            cost_estimate=cost,
        )(x_flat, self._w_stack, self._b_row)

        # (B, OH*W, OCp) -> valid (B, OH, OW, OC); columns >= OW are the
        # row-wrap garbage of the shifted-slice trick and are dropped here.
        return out_full.reshape(B, OH, W, OCp)[:, :, :OW, :OC]

    # -------------------------------------------------------------------- #
    def _im2col_conv(self, x_nhwc, B, OH, OW, budget):
        K, s = self.kernel_size, self.stride
        OC, OCp = self.out_channels, self._ocp
        Kdim, Kdim_p = self._Kdim, self._kdim_p
        tk, tn = self._tk, self._tn
        in_b = 2 if self.use_bf16 else 4

        # One fused XLA op; feature order (c, kh, kw) matches self._w_mat.
        # HIGHEST precision keeps the 0/1 selection conv exact for f32 inputs.
        patches = lax.conv_general_dilated_patches(
            x_nhwc, (K, K), (s, s), padding="VALID",
            dimension_numbers=("NHWC", "HWIO", "NHWC"),
            precision=lax.Precision.HIGHEST)          # (B, OH, OW, Kdim)
        M = B * OH * OW
        patches = patches.reshape(M, Kdim)

        # dtype-aware tm; the 2x factor is the double-buffering.
        min_tm = 16 if self.use_bf16 else 8
        tm = min_tm
        for cand in (1024, 512, 256, 128, 64, 32, 16, 8):
            if cand < min_tm:
                continue
            need = (2 * (cand * tk * in_b + tk * tn * in_b + cand * tn * 4)
                    + cand * tn * 4)
            if need <= budget:
                tm = cand
                break
        tm = min(tm, _round_up(M, min_tm))
        Mp = _round_up(M, tm)

        # Pad rows to Mp and columns to Kdim_p; column `Kdim` carries the ones
        # that pick up the folded bias row (no separate bias input stream).
        patches = jnp.pad(patches, ((0, Mp - M), (0, Kdim_p - Kdim)))
        patches = patches.at[:, Kdim].set(jnp.asarray(1, patches.dtype))

        grid = (Mp // tm, OCp // tn, Kdim_p // tk)
        cost = pl.CostEstimate(
            flops=2 * Mp * Kdim_p * OCp,
            transcendentals=0,
            bytes_accessed=int(Mp * Kdim_p * in_b * grid[1]
                               + Kdim_p * OCp * in_b * grid[0]
                               + Mp * OCp * 4))

        out_flat = pl.pallas_call(
            _matmul_bias_folded_kernel,
            out_shape=jax.ShapeDtypeStruct((Mp, OCp), jnp.float32),
            grid_spec=pltpu.PrefetchScalarGridSpec(
                num_scalar_prefetch=0,
                grid=grid,
                in_specs=[
                    pl.BlockSpec((tm, tk), lambda i, j, k: (i, k)),
                    pl.BlockSpec((tk, tn), lambda i, j, k: (k, j)),
                ],
                out_specs=pl.BlockSpec((tm, tn), lambda i, j, k: (i, j)),
                scratch_shapes=[pltpu.VMEM((tm, tn), jnp.float32)],
            ),
            compiler_params=pltpu.CompilerParams(
                dimension_semantics=("parallel", "parallel", "arbitrary"),
                vmem_limit_bytes=int(budget + (8 << 20))),
            cost_estimate=cost,
        )(patches, self._w_mat)

        return out_flat[:M, :OC].reshape(B, OH, OW, OC)


# ----------------------------------------------------------------------------
# Self-test against an exact XLA reference (same math as the PyTorch loops)
# ----------------------------------------------------------------------------
def _reference_conv(x, weight, bias, stride, padding):
    if padding > 0:
        x = jnp.pad(x, ((0, 0), (0, 0), (padding,) * 2, (padding,) * 2))
    out = lax.conv_general_dilated(
        x, weight, (stride, stride), "VALID",
        dimension_numbers=("NCHW", "OIHW", "NCHW"),
        precision=lax.Precision.HIGHEST)
    return out + bias[None, :, None, None]


if __name__ == "__main__":
    key = jax.random.PRNGKey(0)
    kx, kp1, kp2 = jax.random.split(key, 3)

    B, C, H, W = 2, 4, 16, 16
    OC, K = 8, 3
    x = jax.random.normal(kx, (B, C, H, W), dtype=jnp.float32)

    # 1) fused path (stride=1, padding=0), f32 operands — strict tolerance
    conv1 = MyConv2dPallas(C, OC, K, stride=1, padding=0, key=kp1)
    out1 = jax.block_until_ready(conv1(x))
    ref1 = _reference_conv(x, conv1.weight, conv1.bias, 1, 0)
    assert out1.shape == (B, OC, H - K + 1, W - K + 1)
    assert jnp.allclose(out1, ref1, atol=1e-4, rtol=1e-4)

    # 2) im2col fallback path (stride=2, padding=1), f32 — strict tolerance
    conv2 = MyConv2dPallas(C, OC, K, stride=2, padding=1, key=kp2)
    out2 = jax.block_until_ready(conv2(x))
    ref2 = _reference_conv(x, conv2.weight, conv2.bias, 2, 1)
    assert out2.shape == ref2.shape
    assert jnp.allclose(out2, ref2, atol=1e-4, rtol=1e-4)

    # 3) bf16 operands (recommended on v6e/v7x), fused path — bf16 tolerance
    conv3 = MyConv2dPallas(C, OC, K, stride=1, padding=0, key=kp1,
                           use_bf16=True)
    out3 = jax.block_until_ready(conv3(x))
    assert jnp.allclose(out3, ref1, atol=2e-1, rtol=2e-2)

    print("KERNEL_OK")
</pallas_src>

<mosaic_0001>
module attributes {stable_mosaic.version = 11 : i64} {
  func.func @kernel(%arg0: i32, %arg1: i32, %arg2: memref<1x258x4xf32, #tpu.memory_space<vmem>>, %arg3: memref<9x4x128xf32, #tpu.memory_space<vmem>>, %arg4: memref<1x128xf32, #tpu.memory_space<vmem>>, %arg5: memref<1x224x128xf32, #tpu.memory_space<vmem>>) attributes {dimension_semantics = [#tpu.dimension_semantics<parallel>, #tpu.dimension_semantics<parallel>], iteration_bounds = array<i64: 2, 1>, scalar_prefetch = 0 : i64, scratch_operands = 0 : i64, tpu.core_type = #tpu.core_type<tc>, window_params = [{transform_indices = @transform_0, window_bounds = array<i64: 1, 258, 4>}, {transform_indices = @transform_1, window_bounds = array<i64: 9, 4, 128>}, {transform_indices = @transform_2, window_bounds = array<i64: 1, 128>}, {transform_indices = @transform_3, window_bounds = array<i64: 1, 224, 128>}]} {
    %cst = arith.constant 0.000000e+00 : f32
    %0 = vector.broadcast %cst : f32 to vector<224x128xf32>
    %c0 = arith.constant 0 : index
    %c0_0 = arith.constant 0 : index
    %c0_1 = arith.constant 0 : index
    %1 = vector.load %arg2[%c0, %c0_0, %c0_1] : memref<1x258x4xf32, #tpu.memory_space<vmem>>, vector<1x224x4xf32>
    %2 = vector.shape_cast %1 : vector<1x224x4xf32> to vector<224x4xf32>
    %c0_2 = arith.constant 0 : index
    %c0_3 = arith.constant 0 : index
    %c0_4 = arith.constant 0 : index
    %3 = vector.load %arg3[%c0_2, %c0_3, %c0_4] : memref<9x4x128xf32, #tpu.memory_space<vmem>>, vector<1x4x128xf32>
    %4 = vector.shape_cast %3 : vector<1x4x128xf32> to vector<4x128xf32>
    %cst_5 = arith.constant dense<0.000000e+00> : vector<224x128xf32>
    %5 = tpu.matmul %2, %4, %cst_5 {dimension_numbers = #tpu.dot_dimension_numbers<[1], [0], [0], [1], [0, 0, 1, 1], [], []>} : vector<224x4xf32>, vector<4x128xf32>, vector<224x128xf32> -> vector<224x128xf32>
    %6 = arith.addf %0, %5 : vector<224x128xf32>
    %c0_6 = arith.constant 0 : index
    %c1 = arith.constant 1 : index
    %c0_7 = arith.constant 0 : index
    %7 = vector.load %arg2[%c0_6, %c1, %c0_7] : memref<1x258x4xf32, #tpu.memory_space<vmem>>, vector<1x224x4xf32>
    %8 = vector.shape_cast %7 : vector<1x224x4xf32> to vector<224x4xf32>
    %c1_8 = arith.constant 1 : index
    %c0_9 = arith.constant 0 : index
    %c0_10 = arith.constant 0 : index
    %9 = vector.load %arg3[%c1_8, %c0_9, %c0_10] : memref<9x4x128xf32, #tpu.memory_space<vmem>>, vector<1x4x128xf32>
    %10 = vector.shape_cast %9 : vector<1x4x128xf32> to vector<4x128xf32>
    %cst_11 = arith.constant dense<0.000000e+00> : vector<224x128xf32>
    %11 = tpu.matmul %8, %10, %cst_11 {dimension_numbers = #tpu.dot_dimension_numbers<[1], [0], [0], [1], [0, 0, 1, 1], [], []>} : vector<224x4xf32>, vector<4x128xf32>, vector<224x128xf32> -> vector<224x128xf32>
    %12 = arith.addf %6, %11 : vector<224x128xf32>
    %c0_12 = arith.constant 0 : index
    %c2 = arith.constant 2 : index
    %c0_13 = arith.constant 0 : index
    %13 = vector.load %arg2[%c0_12, %c2, %c0_13] : memref<1x258x4xf32, #tpu.memory_space<vmem>>, vector<1x224x4xf32>
    %14 = vector.shape_cast %13 : vector<1x224x4xf32> to vector<224x4xf32>
    %c2_14 = arith.constant 2 : index
    %c0_15 = arith.constant 0 : index
    %c0_16 = arith.constant 0 : index
    %15 = vector.load %arg3[%c2_14, %c0_15, %c0_16] : memref<9x4x128xf32, #tpu.memory_space<vmem>>, vector<1x4x128xf32>
    %16 = vector.shape_cast %15 : vector<1x4x128xf32> to vector<4x128xf32>
    %cst_17 = arith.constant dense<0.000000e+00> : vector<224x128xf32>
    %17 = tpu.matmul %14, %16, %cst_17 {dimension_numbers = #tpu.dot_dimension_numbers<[1], [0], [0], [1], [0, 0, 1, 1], [], []>} : vector<224x4xf32>, vector<4x128xf32>, vector<224x128xf32> -> vector<224x128xf32>
    %18 = arith.addf %12, %17 : vector<224x128xf32>
    %c0_18 = arith.constant 0 : index
    %c16 = arith.constant 16 : index
    %c0_19 = arith.constant 0 : index
    %19 = vector.load %arg2[%c0_18, %c16, %c0_19] : memref<1x258x4xf32, #tpu.memory_space<vmem>>, vector<1x224x4xf32>
    %20 = vector.shape_cast %19 : vector<1x224x4xf32> to vector<224x4xf32>
    %c3 = arith.constant 3 : index
    %c0_20 = arith.constant 0 : index
    %c0_21 = arith.constant 0 : index
    %21 = vector.load %arg3[%c3, %c0_20, %c0_21] : memref<9x4x128xf32, #tpu.memory_space<vmem>>, vector<1x4x128xf32>
    %22 = vector.shape_cast %21 : vector<1x4x128xf32> to vector<4x128xf32>
    %cst_22 = arith.constant dense<0.000000e+00> : vector<224x128xf32>
    %23 = tpu.matmul %20, %22, %cst_22 {dimension_numbers = #tpu.dot_dimension_numbers<[1], [0], [0], [1], [0, 0, 1, 1], [], []>} : vector<224x4xf32>, vector<4x128xf32>, vector<224x128xf32> -> vector<224x128xf32>
    %24 = arith.addf %18, %23 : vector<224x128xf32>
    %c0_23 = arith.constant 0 : index
    %c17 = arith.constant 17 : index
    %c0_24 = arith.constant 0 : index
    %25 = vector.load %arg2[%c0_23, %c17, %c0_24] : memref<1x258x4xf32, #tpu.memory_space<vmem>>, vector<1x224x4xf32>
    %26 = vector.shape_cast %25 : vector<1x224x4xf32> to vector<224x4xf32>
    %c4 = arith.constant 4 : index
    %c0_25 = arith.constant 0 : index
    %c0_26 = arith.constant 0 : index
    %27 = vector.load %arg3[%c4, %c0_25, %c0_26] : memref<9x4x128xf32, #tpu.memory_space<vmem>>, vector<1x4x128xf32>
    %28 = vector.shape_cast %27 : vector<1x4x128xf32> to vector<4x128xf32>
    %cst_27 = arith.constant dense<0.000000e+00> : vector<224x128xf32>
    %29 = tpu.matmul %26, %28, %cst_27 {dimension_numbers = #tpu.dot_dimension_numbers<[1], [0], [0], [1], [0, 0, 1, 1], [], []>} : vector<224x4xf32>, vector<4x128xf32>, vector<224x128xf32> -> vector<224x128xf32>
    %30 = arith.addf %24, %29 : vector<224x128xf32>
    %c0_28 = arith.constant 0 : index
    %c18 = arith.constant 18 : index
    %c0_29 = arith.constant 0 : index
    %31 = vector.load %arg2[%c0_28, %c18, %c0_29] : memref<1x258x4xf32, #tpu.memory_space<vmem>>, vector<1x224x4xf32>
    %32 = vector.shape_cast %31 : vector<1x224x4xf32> to vector<224x4xf32>
    %c5 = arith.constant 5 : index
    %c0_30 = arith.constant 0 : index
    %c0_31 = arith.constant 0 : index
    %33 = vector.load %arg3[%c5, %c0_30, %c0_31] : memref<9x4x128xf32, #tpu.memory_space<vmem>>, vector<1x4x128xf32>
    %34 = vector.shape_cast %33 : vector<1x4x128xf32> to vector<4x128xf32>
    %cst_32 = arith.constant dense<0.000000e+00> : vector<224x128xf32>
    %35 = tpu.matmul %32, %34, %cst_32 {dimension_numbers = #tpu.dot_dimension_numbers<[1], [0], [0], [1], [0, 0, 1, 1], [], []>} : vector<224x4xf32>, vector<4x128xf32>, vector<224x128xf32> -> vector<224x128xf32>
    %36 = arith.addf %30, %35 : vector<224x128xf32>
    %c0_33 = arith.constant 0 : index
    %c32 = arith.constant 32 : index
    %c0_34 = arith.constant 0 : index
    %37 = vector.load %arg2[%c0_33, %c32, %c0_34] : memref<1x258x4xf32, #tpu.memory_space<vmem>>, vector<1x224x4xf32>
    %38 = vector.shape_cast %37 : vector<1x224x4xf32> to vector<224x4xf32>
    %c6 = arith.constant 6 : index
    %c0_35 = arith.constant 0 : index
    %c0_36 = arith.constant 0 : index
    %39 = vector.load %arg3[%c6, %c0_35, %c0_36] : memref<9x4x128xf32, #tpu.memory_space<vmem>>, vector<1x4x128xf32>
    %40 = vector.shape_cast %39 : vector<1x4x128xf32> to vector<4x128xf32>
    %cst_37 = arith.constant dense<0.000000e+00> : vector<224x128xf32>
    %41 = tpu.matmul %38, %40, %cst_37 {dimension_numbers = #tpu.dot_dimension_numbers<[1], [0], [0], [1], [0, 0, 1, 1], [], []>} : vector<224x4xf32>, vector<4x128xf32>, vector<224x128xf32> -> vector<224x128xf32>
    %42 = arith.addf %36, %41 : vector<224x128xf32>
    %c0_38 = arith.constant 0 : index
    %c33 = arith.constant 33 : index
    %c0_39 = arith.constant 0 : index
    %43 = vector.load %arg2[%c0_38, %c33, %c0_39] : memref<1x258x4xf32, #tpu.memory_space<vmem>>, vector<1x224x4xf32>
    %44 = vector.shape_cast %43 : vector<1x224x4xf32> to vector<224x4xf32>
    %c7 = arith.constant 7 : index
    %c0_40 = arith.constant 0 : index
    %c0_41 = arith.constant 0 : index
    %45 = vector.load %arg3[%c7, %c0_40, %c0_41] : memref<9x4x128xf32, #tpu.memory_space<vmem>>, vector<1x4x128xf32>
    %46 = vector.shape_cast %45 : vector<1x4x128xf32> to vector<4x128xf32>
    %cst_42 = arith.constant dense<0.000000e+00> : vector<224x128xf32>
    %47 = tpu.matmul %44, %46, %cst_42 {dimension_numbers = #tpu.dot_dimension_numbers<[1], [0], [0], [1], [0, 0, 1, 1], [], []>} : vector<224x4xf32>, vector<4x128xf32>, vector<224x128xf32> -> vector<224x128xf32>
    %48 = arith.addf %42, %47 : vector<224x128xf32>
    %c0_43 = arith.constant 0 : index
    %c34 = arith.constant 34 : index
    %c0_44 = arith.constant 0 : index
    %49 = vector.load %arg2[%c0_43, %c34, %c0_44] : memref<1x258x4xf32, #tpu.memory_space<vmem>>, vector<1x224x4xf32>
    %50 = vector.shape_cast %49 : vector<1x224x4xf32> to vector<224x4xf32>
    %c8 = arith.constant 8 : index
    %c0_45 = arith.constant 0 : index
    %c0_46 = arith.constant 0 : index
    %51 = vector.load %arg3[%c8, %c0_45, %c0_46] : memref<9x4x128xf32, #tpu.memory_space<vmem>>, vector<1x4x128xf32>
    %52 = vector.shape_cast %51 : vector<1x4x128xf32> to vector<4x128xf32>
    %cst_47 = arith.constant dense<0.000000e+00> : vector<224x128xf32>
    %53 = tpu.matmul %50, %52, %cst_47 {dimension_numbers = #tpu.dot_dimension_numbers<[1], [0], [0], [1], [0, 0, 1, 1], [], []>} : vector<224x4xf32>, vector<4x128xf32>, vector<224x128xf32> -> vector<224x128xf32>
    %54 = arith.addf %48, %53 : vector<224x128xf32>
    %c0_48 = arith.constant 0 : index
    %c0_49 = arith.constant 0 : index
    %55 = vector.load %arg4[%c0_48, %c0_49] : memref<1x128xf32, #tpu.memory_space<vmem>>, vector<1x128xf32>
    %56 = vector.broadcast %55 : vector<1x128xf32> to vector<224x128xf32>
    %57 = arith.addf %54, %56 : vector<224x128xf32>
    %c0_50 = arith.constant 0 : index
    %c0_51 = arith.constant 0 : index
    %c0_52 = arith.constant 0 : index
    %58 = vector.load %arg5[%c0_50, %c0_51, %c0_52] : memref<1x224x128xf32, #tpu.memory_space<vmem>>, vector<1x224x128xf32>
    %59 = vector.shape_cast %58 : vector<1x224x128xf32> to vector<224x128xf32>
    %60 = vector.shape_cast %57 : vector<224x128xf32> to vector<1x224x128xf32>
    tpu.vector_store %arg5[%c0_50, %c0_51, %c0_52], %60 {strides = array<i32>} : memref<1x224x128xf32, #tpu.memory_space<vmem>>, vector<1x224x128xf32>,
    return
  }
  func.func @transform_0(%arg0: i32, %arg1: i32) -> (i32, i32, i32) {
    %c0_i32 = arith.constant 0 : i32
    %c0_i32_0 = arith.constant 0 : i32
    %c0_i32_1 = arith.constant 0 : i32
    return %arg0, %c0_i32, %c0_i32_0 : i32, i32, i32
  }
  func.func @transform_1(%arg0: i32, %arg1: i32) -> (i32, i32, i32) {
    %c0_i32 = arith.constant 0 : i32
    %c0_i32_0 = arith.constant 0 : i32
    %c0_i32_1 = arith.constant 0 : i32
    return %c0_i32, %c0_i32_0, %arg1 : i32, i32, i32
  }
  func.func @transform_2(%arg0: i32, %arg1: i32) -> (i32, i32) {
    %c0_i32 = arith.constant 0 : i32
    %c0_i32_0 = arith.constant 0 : i32
    return %c0_i32, %arg1 : i32, i32
  }
  func.func @transform_3(%arg0: i32, %arg1: i32) -> (i32, i32, i32) {
    %c0_i32 = arith.constant 0 : i32
    %c0_i32_0 = arith.constant 0 : i32
    return %arg0, %c0_i32, %arg1 : i32, i32, i32
  }
}

</mosaic_0001>

<llo_original>
// kernel: _forward_impl.1
$region0: #{_forward_impl.1}
  #allocation0 [shape = 'u32[]', space=smem, size = 0x4, offset = 0x4, fixed_abs, tag = 'smem constant byte address 0x4 - core index']
  #allocation1 [shape = 'u32[72,128]{1,0:T(1,128)}', space=vmem, size = 0x9000, scoped, tag = 'internal scratch']
  %s0 = inlined_call_operand.vmem [shape: f32[2,258,4], index: 0, kind: input, shape index: {}]
  %s1 = inlined_call_operand.vmem [shape: f32[9,4,128], index: 1, kind: input, shape index: {}]
  %s2 = inlined_call_operand.vmem [shape: f32[1,128], index: 2, kind: input, shape index: {}]
  %s3 = inlined_call_operand.vmem [shape: f32[2,224,128], index: 3, kind: output, shape index: {}]
  %s4 = sld [smem:[#allocation0]]
  $region45: #{_forward_impl.1} parent=0
    _
  %s6 = ssub.s32 1, %s4
  %s7 = scalar_select 0, %s6, %s4
  loop: start=0, step=1, limit=4
  $region2: #{_forward_impl.1} parent=0 // loop_pre_header
    _
  $region3: #{_forward_impl.1} parent=0 // loop_header
    %s9 = sphi 0, %s13
    %p10 = scmp.ge.s32.totalorder %s9, 4
    %s16 = sphi 0, %s28
    %s17 = sphi 0, %s24
    %s18 = sphi 0, %s16
    %s19 = sphi 0, %s17
    %s20 = sphi 0, %s18
    %s21 = sphi 0, %s19
    %s31 = sphi 0, %s33
    %s34 = sphi 0, %s31
    %s35 = sphi 0, %s34
    %s51 = sphi 0, %s35
    %s57 = sphi 0, %s59
    %s60 = sphi 0, %s57
    %s61 = sphi 0, %s60
    %s77 = sphi 0, %s61
    %s83 = sphi 0, %s85
    %s86 = sphi 0, %s83
    %s87 = sphi 0, %s86
    %s103 = sphi 0, %s87
    %s111 = sphi 0, %s113
    %s114 = sphi 0, %s111
    %s115 = sphi 0, %s114
    %s131 = sphi 0, %s115
  $region4: #{_forward_impl.1} parent=0 // loop_header_branch
    %12 = sbr.rel (%p10) target = $region8
  $region5: #{_forward_impl.1} parent=0 // loop_body
    %s14 = ssub.s32 %s9, 1
    %s15 = ssub.s32 %s9, 2
    %s22 = sadd.s32 1, %s17
    %p23 = scmp.ge.s32.totalorder %s22, 1
    %s24 = scalar_select %p23, 0, %s22
    %s25 = sadd.s32 1, %s16
    %s26 = scalar_select %p23, %s25, %s16
    %p27 = scmp.ge.s32.totalorder %s26, 2
    %s28 = scalar_select %p27, 0, %s26
    %s29 = ssub.s32 %s16, %s28
    %p30 = scmp.eq.s32.totalorder %s29, 0
    %s32 = sadd.s32 %s31, 1
    %s33 = scalar_select %p30, %s31, %s32
    %p36 = pneg %p30
    %p37 = scmp.eq.s32.totalorder %s9, 1
    %p38 = por %p36, %p37
    %p39 = scmp.ne.s32.totalorder %s31, %s34
    %p40 = scmp.eq.s32.totalorder %s9, 0
    %p41 = por %p39, %p40
    %p42 = scmp.ne.s32.totalorder %s31, %s34
    %p43 = scmp.eq.s32.totalorder %s14, 1
    %p44 = por %p42, %p43
    %p45 = scmp.ne.s32.totalorder %s34, %s35
    %p46 = scmp.eq.s32.totalorder %s14, 0
    %p47 = por %p45, %p46
    %p48 = scmp.ne.s32.totalorder %s34, %s35
    %p49 = scmp.eq.s32.totalorder %s15, 1
    %p50 = por %p48, %p49
    %p52 = scmp.ne.s32.totalorder %s35, %s51
    %p53 = scmp.eq.s32.totalorder %s15, 0
    %p54 = por %p52, %p53
    %s55 = ssub.s32 %s17, %s24
    %p56 = scmp.eq.s32.totalorder %s55, 0
    %s58 = sadd.s32 %s57, 1
    %s59 = scalar_select %p56, %s57, %s58
    %p62 = pneg %p56
    %p63 = scmp.eq.s32.totalorder %s9, 1
    %p64 = por %p62, %p63
    %p65 = scmp.ne.s32.totalorder %s57, %s60
    %p66 = scmp.eq.s32.totalorder %s9, 0
    %p67 = por %p65, %p66
    %p68 = scmp.ne.s32.totalorder %s57, %s60
    %p69 = scmp.eq.s32.totalorder %s14, 1
    %p70 = por %p68, %p69
    %p71 = scmp.ne.s32.totalorder %s60, %s61
    %p72 = scmp.eq.s32.totalorder %s14, 0
    %p73 = por %p71, %p72
    %p74 = scmp.ne.s32.totalorder %s60, %s61
    %p75 = scmp.eq.s32.totalorder %s15, 1
    %p76 = por %p74, %p75
    %p78 = scmp.ne.s32.totalorder %s61, %s77
    %p79 = scmp.eq.s32.totalorder %s15, 0
    %p80 = por %p78, %p79
    %s81 = ssub.s32 %s17, %s24
    %p82 = scmp.eq.s32.totalorder %s81, 0
    %s84 = sadd.s32 %s83, 1
    %s85 = scalar_select %p82, %s83, %s84
    %p88 = pneg %p82
    %p89 = scmp.eq.s32.totalorder %s9, 1
    %p90 = por %p88, %p89
    %p91 = scmp.ne.s32.totalorder %s83, %s86
    %p92 = scmp.eq.s32.totalorder %s9, 0
    %p93 = por %p91, %p92
    %p94 = scmp.ne.s32.totalorder %s83, %s86
    %p95 = scmp.eq.s32.totalorder %s14, 1
    %p96 = por %p94, %p95
    %p97 = scmp.ne.s32.totalorder %s86, %s87
    %p98 = scmp.eq.s32.totalorder %s14, 0
    %p99 = por %p97, %p98
    %p100 = scmp.ne.s32.totalorder %s86, %s87
    %p101 = scmp.eq.s32.totalorder %s15, 1
    %p102 = por %p100, %p101
    %p104 = scmp.ne.s32.totalorder %s87, %s103
    %p105 = scmp.eq.s32.totalorder %s15, 0
    %p106 = por %p104, %p105
    %s107 = ssub.s32 %s16, %s28
    %s108 = ssub.s32 %s17, %s24
    %s109 = sor.u32 %s107, %s108
    %p110 = scmp.eq.s32.totalorder %s109, 0
    %s112 = sadd.s32 %s111, 1
    %s113 = scalar_select %p110, %s111, %s112
    %p116 = pneg %p110
    %p117 = scmp.eq.s32.totalorder %s9, 1
    %p118 = por %p116, %p117
    %p119 = scmp.ne.s32.totalorder %s111, %s114
    %p120 = scmp.eq.s32.totalorder %s9, 0
    %p121 = por %p119, %p120
    %p122 = scmp.ne.s32.totalorder %s111, %s114
    %p123 = scmp.eq.s32.totalorder %s14, 1
    %p124 = por %p122, %p123
    %p125 = scmp.ne.s32.totalorder %s114, %s115
    %p126 = scmp.eq.s32.totalorder %s14, 0
    %p127 = por %p125, %p126
    %p128 = scmp.ne.s32.totalorder %s114, %s115
    %p129 = scmp.eq.s32.totalorder %s15, 1
    %p130 = por %p128, %p129
    %p132 = scmp.ne.s32.totalorder %s115, %s131
    %p133 = scmp.eq.s32.totalorder %s15, 0
    %p134 = por %p132, %p133
    %p135 = scmp.le.s32.totalorder 1, %s9
    %p136 = scmp.lt.s32.totalorder %s9, 3
    %p137 = pnand %p135, %p136
    %p138 = pneg %p137
    // Predicated region
    $region9: #{_forward_impl.1} parent=5 // pred_check
      _
    $region10: #{_forward_impl.1} parent=5 // pred_check_branch
      %140 = sbr.rel (%p137) target = $region12
    $region11: #{_forward_impl.1} parent=5 // pred_region
      %s141 = ssub.s32 %s9, 1
      // Predicated region
      $region13: #{_forward_impl.1} parent=11 // pred_check
        %p142 = pneg %p73
      $region14: #{_forward_impl.1} parent=11 // pred_check_branch
        %144 = sbr.rel (%p142) target = $region16
      $region15: #{_forward_impl.1} parent=11 // pred_region
        %p145 = scmp.lt.s32.totalorder %s19, 0
        %s146 = scalar_select %p145, %s19, 0
        %s147 = smul.addr %s146, 4
        %s148 = scalar_lea.vmem %s1, %s147
      $region16: #{_forward_impl.1} parent=11 // pred_fallthru
        _
      // Predicated region
      $region17: #{_forward_impl.1} parent=11 // pred_check
        %p149 = pneg %p99
      $region18: #{_forward_impl.1} parent=11 // pred_check_branch
        %151 = sbr.rel (%p149) target = $region20
      $region19: #{_forward_impl.1} parent=11 // pred_region
        %p152 = scmp.lt.s32.totalorder %s19, 0
        %s153 = scalar_select %p152, %s19, 0
        %s154 = scalar_lea.vmem %s2, %s153
      $region20: #{_forward_impl.1} parent=11 // pred_fallthru
        _
    $region12: #{_forward_impl.1} parent=5 // pred_fallthru
      _
    %p155 = scmp.lt.s32.totalorder %s9, 2
    // Predicated region
    $region21: #{_forward_impl.1} parent=5 // pred_check
      %p156 = pneg %p155
    $region22: #{_forward_impl.1} parent=5 // pred_check_branch
      %158 = sbr.rel (%p156) target = $region24
    $region23: #{_forward_impl.1} parent=5 // pred_region
      // Predicated region
      $region25: #{_forward_impl.1} parent=23 // pred_check
        %p159 = pneg %p41
      $region26: #{_forward_impl.1} parent=23 // pred_check_branch
        %161 = sbr.rel (%p159) target = $region28
      $region27: #{_forward_impl.1} parent=23 // pred_region
        %p162 = scmp.lt.s32.totalorder %s16, 1
        %s163 = scalar_select %p162, %s16, 1
        %s164 = smul.addr %s163, 33
        %s165 = smul.addr %s164, 8
        %s166 = scalar_lea.vmem %s0, %s165
      $region28: #{_forward_impl.1} parent=23 // pred_fallthru
        _
    $region24: #{_forward_impl.1} parent=5 // pred_fallthru
      _
    %p167 = scmp.le.s32.totalorder 1, %s9
    %p168 = scmp.lt.s32.totalorder %s9, 3
    %p169 = pnand %p167, %p168
    %p170 = pneg %p169
    // Predicated region
    $region29: #{_forward_impl.1} parent=5 // pred_check
      _
    $region30: #{_forward_impl.1} parent=5 // pred_check_branch
      %172 = sbr.rel (%p169) target = $region32
    $region31: #{_forward_impl.1} parent=5 // pred_region
      %s173 = ssub.s32 %s9, 1
      %p174 = scmp.lt.s32.totalorder %s18, 1
      %s175 = scalar_select %p174, %s18, 1
      %s176 = smul.addr %s175, 33
      %s177 = smul.addr %s176, 8
      %s178 = scalar_lea.vmem %s0, %s177
      %p179 = pneg %p47
      %p180 = pneg %p44
      %p181 = scmp.lt.s32.totalorder %s19, 0
      %s182 = scalar_select %p181, %s19, 0
      %s183 = smul.addr %s182, 4
      %s184 = scalar_lea.vmem %s1, %s183
      %p185 = pneg %p73
      %p186 = pneg %p70
      %p187 = scmp.lt.s32.totalorder %s19, 0
      %s188 = scalar_select %p187, %s19, 0
      %s189 = scalar_lea.vmem %s2, %s188
      %p190 = pneg %p99
      %p191 = pneg %p96
      %p192 = pneg %p127
      %p193 = pneg %p124
      %p194 = scmp.lt.s32.totalorder %s18, 1
      %s195 = scalar_select %p194, %s18, 1
      %p196 = scmp.lt.s32.totalorder %s19, 0
      %s197 = scalar_select %p196, %s19, 0
      %s198 = smul.addr %s195, 28
      %s199 = sadd.s32 %s197, %s198
      %s200 = smul.addr %s199, 8
      %s201 = scalar_lea.vmem %s3, %s200
      %p202 = scmp.lt.s32.totalorder %s18, 1
      %s203 = scalar_select %p202, %s18, 1
      %s204 = smul.addr %s203, 33
      %s205 = smul.addr %s204, 8
      %s206 = scalar_lea.vmem %s0, %s205
      %p207 = scmp.lt.s32.totalorder %s19, 0
      %s208 = scalar_select %p207, %s19, 0
      %s209 = smul.addr %s208, 4
      %s210 = scalar_lea.vmem %s1, %s209
      %p211 = scmp.lt.s32.totalorder %s19, 0
      %s212 = scalar_select %p211, %s19, 0
      %s213 = scalar_lea.vmem %s2, %s212
      %p214 = scmp.lt.s32.totalorder %s18, 1
      %s215 = scalar_select %p214, %s18, 1
      %p216 = scmp.lt.s32.totalorder %s19, 0
      %s217 = scalar_select %p216, %s19, 0
      %s218 = smul.addr %s215, 28
      %s219 = sadd.s32 %s217, %s218
      %s220 = smul.addr %s219, 8
      %s221 = scalar_lea.vmem %s3, %s220
      %v222 = vld [vmem:[%s206] sm:$0xff]
      %v223 = vld [vmem:[%s206 + $0x8] sm:$0xff]
      %v224 = vld [vmem:[%s206 + $0x10] sm:$0xff]
      %v225 = vld [vmem:[%s206 + $0x18] sm:$0xff]
      %v226 = vld [vmem:[%s206 + $0x20] sm:$0xff]
      %v227 = vld [vmem:[%s206 + $0x28] sm:$0xff]
      %v228 = vld [vmem:[%s206 + $0x30] sm:$0xff]
      %v229 = vld [vmem:[%s206 + $0x38] sm:$0xff]
      %v230 = vld [vmem:[%s206 + $0x40] sm:$0xff]
      %v231 = vld [vmem:[%s206 + $0x48] sm:$0xff]
      %v232 = vld [vmem:[%s206 + $0x50] sm:$0xff]
      %v233 = vld [vmem:[%s206 + $0x58] sm:$0xff]
      %v234 = vld [vmem:[%s206 + $0x60] sm:$0xff]
      %v235 = vld [vmem:[%s206 + $0x68] sm:$0xff]
      %v236 = vld [vmem:[%s206 + $0x70] sm:$0xff]
      %v237 = vld [vmem:[%s206 + $0x78] sm:$0xff]
      %v238 = vld [vmem:[%s206 + $0x80] sm:$0xff]
      %v239 = vld [vmem:[%s206 + $0x88] sm:$0xff]
      %v240 = vld [vmem:[%s206 + $0x90] sm:$0xff]
      %v241 = vld [vmem:[%s206 + $0x98] sm:$0xff]
      %v242 = vld [vmem:[%s206 + $0xa0] sm:$0xff]
      %v243 = vld [vmem:[%s206 + $0xa8] sm:$0xff]
      %v244 = vld [vmem:[%s206 + $0xb0] sm:$0xff]
      %v245 = vld [vmem:[%s206 + $0xb8] sm:$0xff]
      %v246 = vld [vmem:[%s206 + $0xc0] sm:$0xff]
      %v247 = vld [vmem:[%s206 + $0xc8] sm:$0xff]
      %v248 = vld [vmem:[%s206 + $0xd0] sm:$0xff]
      %v249 = vld [vmem:[%s206 + $0xd8] sm:$0xff]
      %v250 = vld [vmem:[%s210] sm:$0xf]
      %v251 = vld [vmem:[%s206 + $0x1] sm:$0xff]
      %v252 = vld [vmem:[%s206 + $0x9] sm:$0xff]
      %v253 = vld [vmem:[%s206 + $0x11] sm:$0xff]
      %v254 = vld [vmem:[%s206 + $0x19] sm:$0xff]
      %v255 = vld [vmem:[%s206 + $0x21] sm:$0xff]
      %v256 = vld [vmem:[%s206 + $0x29] sm:$0xff]
      %v257 = vld [vmem:[%s206 + $0x31] sm:$0xff]
      %v258 = vld [vmem:[%s206 + $0x39] sm:$0xff]
      %v259 = vld [vmem:[%s206 + $0x41] sm:$0xff]
      %v260 = vld [vmem:[%s206 + $0x49] sm:$0xff]
      %v261 = vld [vmem:[%s206 + $0x51] sm:$0xff]
      %v262 = vld [vmem:[%s206 + $0x59] sm:$0xff]
      %v263 = vld [vmem:[%s206 + $0x61] sm:$0xff]
      %v264 = vld [vmem:[%s206 + $0x69] sm:$0xff]
      %v265 = vld [vmem:[%s206 + $0x71] sm:$0xff]
      %v266 = vld [vmem:[%s206 + $0x79] sm:$0xff]
      %v267 = vld [vmem:[%s206 + $0x81] sm:$0xff]
      %v268 = vld [vmem:[%s206 + $0x89] sm:$0xff]
      %v269 = vld [vmem:[%s206 + $0x91] sm:$0xff]
      %v270 = vld [vmem:[%s206 + $0x99] sm:$0xff]
      %v271 = vld [vmem:[%s206 + $0xa1] sm:$0xff]
      %v272 = vld [vmem:[%s206 + $0xa9] sm:$0xff]
      %v273 = vld [vmem:[%s206 + $0xb1] sm:$0xff]
      %v274 = vld [vmem:[%s206 + $0xb9] sm:$0xff]
      %v275 = vld [vmem:[%s206 + $0xc1] sm:$0xff]
      %v276 = vld [vmem:[%s206 + $0xc9] sm:$0xff]
      %v277 = vld [vmem:[%s206 + $0xd1] sm:$0xff]
      %v278 = vld [vmem:[%s206 + $0xd9] sm:$0xff]
      %s279 = scalar_lea.vmem %s210, 4
      %v280 = vld [vmem:[%s279] sm:$0xf]
      %vm281 = vcmask 31744
      %v283 = vsel %vm281, %v251, 0
      %v286 = vsel %vm281, %v252, 0
      %v289 = vsel %vm281, %v253, 0
      %v292 = vsel %vm281, %v254, 0
      %v295 = vsel %vm281, %v255, 0
      %v298 = vsel %vm281, %v256, 0
      %v301 = vsel %vm281, %v257, 0
      %v304 = vsel %vm281, %v258, 0
      %v307 = vsel %vm281, %v259, 0
      %v310 = vsel %vm281, %v260, 0
      %v313 = vsel %vm281, %v261, 0
      %v316 = vsel %vm281, %v262, 0
      %v319 = vsel %vm281, %v263, 0
      %v322 = vsel %vm281, %v264, 0
      %v325 = vsel %vm281, %v265, 0
      %v328 = vsel %vm281, %v266, 0
      %v331 = vsel %vm281, %v267, 0
      %v334 = vsel %vm281, %v268, 0
      %v337 = vsel %vm281, %v269, 0
      %v340 = vsel %vm281, %v270, 0
      %v343 = vsel %vm281, %v271, 0
      %v346 = vsel %vm281, %v272, 0
      %v349 = vsel %vm281, %v273, 0
      %v352 = vsel %vm281, %v274, 0
      %v355 = vsel %vm281, %v275, 0
      %v358 = vsel %vm281, %v276, 0
      %v361 = vsel %vm281, %v277, 0
      %v364 = vsel %vm281, %v278, 0
      %vm366 = vcmask 1043456
      %v368 = vsel %vm366, %v280, 0
      %370 = vmatpush.msra.mxu0 0.0
      %371 = vmatpush.msra.mxu0 0.0
      %372 = vmatpush.msra.mxu0 0.0
      %373 = vmatpush.msra.mxu0 0.0
      %374 = vmatpush.msra.mxu0 0.0
      %375 = vmatpush.msra.mxu0 0.0
      %376 = vmatpush.msra.mxu0 0.0
      %377 = vmatpush.msra.mxu0 0.0
      %378 = vmatpush.msra.mxu0 0.0
      %379 = vmatpush.msra.mxu0 0.0
      %380 = vmatpush.msra.mxu0 0.0
      %381 = vmatpush.msra.mxu0 0.0
      %382 = vmatpush.msra.mxu0 0.0
      %383 = vmatpush.msra.mxu0 0.0
      %384 = vmatpush.msra.mxu0 0.0
      %385 = vmatpush.msra.mxu0 %v368
      %386 = vmatmul.f32.gmra.mxu0 %v283
      %v387 = vpop.f32.mrf.mxu0
      %v388 = vadd.f32 0.0, %v387
      %389 = vmatmul.f32.gmra.mxu0 %v286
      %v390 = vpop.f32.mrf.mxu0
      %v391 = vadd.f32 0.0, %v390
      %392 = vmatmul.f32.gmra.mxu0 %v289
      %v393 = vpop.f32.mrf.mxu0
      %v394 = vadd.f32 0.0, %v393
      %395 = vmatmul.f32.gmra.mxu0 %v292
      %v396 = vpop.f32.mrf.mxu0
      %v397 = vadd.f32 0.0, %v396
      %398 = vmatmul.f32.gmra.mxu0 %v295
      %v399 = vpop.f32.mrf.mxu0
      %v400 = vadd.f32 0.0, %v399
      %401 = vmatmul.f32.gmra.mxu0 %v298
      %v402 = vpop.f32.mrf.mxu0
      %v403 = vadd.f32 0.0, %v402
      %404 = vmatmul.f32.gmra.mxu0 %v301
      %v405 = vpop.f32.mrf.mxu0
      %v406 = vadd.f32 0.0, %v405
      %407 = vmatmul.f32.gmra.mxu0 %v304
      %v408 = vpop.f32.mrf.mxu0
      %v409 = vadd.f32 0.0, %v408
      %410 = vmatmul.f32.gmra.mxu0 %v307
      %v411 = vpop.f32.mrf.mxu0
      %v412 = vadd.f32 0.0, %v411
      %413 = vmatmul.f32.gmra.mxu0 %v310
      %v414 = vpop.f32.mrf.mxu0
      %v415 = vadd.f32 0.0, %v414
      %416 = vmatmul.f32.gmra.mxu0 %v313
      %v417 = vpop.f32.mrf.mxu0
      %v418 = vadd.f32 0.0, %v417
      %419 = vmatmul.f32.gmra.mxu0 %v316
      %v420 = vpop.f32.mrf.mxu0
      %v421 = vadd.f32 0.0, %v420
      %422 = vmatmul.f32.gmra.mxu0 %v319
      %v423 = vpop.f32.mrf.mxu0
      %v424 = vadd.f32 0.0, %v423
      %425 = vmatmul.f32.gmra.mxu0 %v322
      %v426 = vpop.f32.mrf.mxu0
      %v427 = vadd.f32 0.0, %v426
      %428 = vmatmul.f32.gmra.mxu0 %v325
      %v429 = vpop.f32.mrf.mxu0
      %v430 = vadd.f32 0.0, %v429
      %431 = vmatmul.f32.gmra.mxu0 %v328
      %v432 = vpop.f32.mrf.mxu0
      %v433 = vadd.f32 0.0, %v432
      %434 = vmatmul.f32.gmra.mxu0 %v331
      %v435 = vpop.f32.mrf.mxu0
      %v436 = vadd.f32 0.0, %v435
      %437 = vmatmul.f32.gmra.mxu0 %v334
      %v438 = vpop.f32.mrf.mxu0
      %v439 = vadd.f32 0.0, %v438
      %440 = vmatmul.f32.gmra.mxu0 %v337
      %v441 = vpop.f32.mrf.mxu0
      %v442 = vadd.f32 0.0, %v441
      %443 = vmatmul.f32.gmra.mxu0 %v340
      %v444 = vpop.f32.mrf.mxu0
      %v445 = vadd.f32 0.0, %v444
      %446 = vmatmul.f32.gmra.mxu0 %v343
      %v447 = vpop.f32.mrf.mxu0
      %v448 = vadd.f32 0.0, %v447
      %449 = vmatmul.f32.gmra.mxu0 %v346
      %v450 = vpop.f32.mrf.mxu0
      %v451 = vadd.f32 0.0, %v450
      %452 = vmatmul.f32.gmra.mxu0 %v349
      %v453 = vpop.f32.mrf.mxu0
      %v454 = vadd.f32 0.0, %v453
      %455 = vmatmul.f32.gmra.mxu0 %v352
      %v456 = vpop.f32.mrf.mxu0
      %v457 = vadd.f32 0.0, %v456
      %458 = vmatmul.f32.gmra.mxu0 %v355
      %v459 = vpop.f32.mrf.mxu0
      %v460 = vadd.f32 0.0, %v459
      %461 = vmatmul.f32.gmra.mxu0 %v358
      %v462 = vpop.f32.mrf.mxu0
      %v463 = vadd.f32 0.0, %v462
      %464 = vmatmul.f32.gmra.mxu0 %v361
      %v465 = vpop.f32.mrf.mxu0
      %v466 = vadd.f32 0.0, %v465
      %467 = vmatmul.f32.gmra.mxu0 %v364
      %v468 = vpop.f32.mrf.mxu0
      %v469 = vadd.f32 0.0, %v468
      %470 = vdwg.mxu0
      %v472 = vsel %vm281, %v222, 0
      %v475 = vsel %vm281, %v223, 0
      %v478 = vsel %vm281, %v224, 0
      %v481 = vsel %vm281, %v225, 0
      %v484 = vsel %vm281, %v226, 0
      %v487 = vsel %vm281, %v227, 0
      %v490 = vsel %vm281, %v228, 0
      %v493 = vsel %vm281, %v229, 0
      %v496 = vsel %vm281, %v230, 0
      %v499 = vsel %vm281, %v231, 0
      %v502 = vsel %vm281, %v232, 0
      %v505 = vsel %vm281, %v233, 0
      %v508 = vsel %vm281, %v234, 0
      %v511 = vsel %vm281, %v235, 0
      %v514 = vsel %vm281, %v236, 0
      %v517 = vsel %vm281, %v237, 0
      %v520 = vsel %vm281, %v238, 0
      %v523 = vsel %vm281, %v239, 0
      %v526 = vsel %vm281, %v240, 0
      %v529 = vsel %vm281, %v241, 0
      %v532 = vsel %vm281, %v242, 0
      %v535 = vsel %vm281, %v243, 0
      %v538 = vsel %vm281, %v244, 0
      %v541 = vsel %vm281, %v245, 0
      %v544 = vsel %vm281, %v246, 0
      %v547 = vsel %vm281, %v247, 0
      %v550 = vsel %vm281, %v248, 0
      %v553 = vsel %vm281, %v249, 0
      %v556 = vsel %vm366, %v250, 0
      %558 = vmatpush.msra.mxu0 0.0
      %559 = vmatpush.msra.mxu0 0.0
      %560 = vmatpush.msra.mxu0 0.0
      %561 = vmatpush.msra.mxu0 0.0
      %562 = vmatpush.msra.mxu0 0.0
      %563 = vmatpush.msra.mxu0 0.0
      %564 = vmatpush.msra.mxu0 0.0
      %565 = vmatpush.msra.mxu0 0.0
      %566 = vmatpush.msra.mxu0 0.0
      %567 = vmatpush.msra.mxu0 0.0
      %568 = vmatpush.msra.mxu0 0.0
      %569 = vmatpush.msra.mxu0 0.0
      %570 = vmatpush.msra.mxu0 0.0
      %571 = vmatpush.msra.mxu0 0.0
      %572 = vmatpush.msra.mxu0 0.0
      %573 = vmatpush.msra.mxu0 %v556
      %574 = vmatmul.f32.gmra.mxu0 %v472
      %v575 = vpop.f32.mrf.mxu0
      %v576 = vadd.f32 %v388, %v575
      %577 = vmatmul.f32.gmra.mxu0 %v475
      %v578 = vpop.f32.mrf.mxu0
      %v579 = vadd.f32 %v391, %v578
      %580 = vmatmul.f32.gmra.mxu0 %v478
      %v581 = vpop.f32.mrf.mxu0
      %v582 = vadd.f32 %v394, %v581
      %583 = vmatmul.f32.gmra.mxu0 %v481
      %v584 = vpop.f32.mrf.mxu0
      %v585 = vadd.f32 %v397, %v584
      %586 = vmatmul.f32.gmra.mxu0 %v484
      %v587 = vpop.f32.mrf.mxu0
      %v588 = vadd.f32 %v400, %v587
      %589 = vmatmul.f32.gmra.mxu0 %v487
      %v590 = vpop.f32.mrf.mxu0
      %v591 = vadd.f32 %v403, %v590
      %592 = vmatmul.f32.gmra.mxu0 %v490
      %v593 = vpop.f32.mrf.mxu0
      %v594 = vadd.f32 %v406, %v593
      %595 = vmatmul.f32.gmra.mxu0 %v493
      %v596 = vpop.f32.mrf.mxu0
      %v597 = vadd.f32 %v409, %v596
      %598 = vmatmul.f32.gmra.mxu0 %v496
      %v599 = vpop.f32.mrf.mxu0
      %v600 = vadd.f32 %v412, %v599
      %601 = vmatmul.f32.gmra.mxu0 %v499
      %v602 = vpop.f32.mrf.mxu0
      %v603 = vadd.f32 %v415, %v602
      %604 = vmatmul.f32.gmra.mxu0 %v502
      %v605 = vpop.f32.mrf.mxu0
      %v606 = vadd.f32 %v418, %v605
      %607 = vmatmul.f32.gmra.mxu0 %v505
      %v608 = vpop.f32.mrf.mxu0
      %v609 = vadd.f32 %v421, %v608
      %610 = vmatmul.f32.gmra.mxu0 %v508
      %v611 = vpop.f32.mrf.mxu0
      %v612 = vadd.f32 %v424, %v611
      %613 = vmatmul.f32.gmra.mxu0 %v511
      %v614 = vpop.f32.mrf.mxu0
      %v615 = vadd.f32 %v427, %v614
      %616 = vmatmul.f32.gmra.mxu0 %v514
      %v617 = vpop.f32.mrf.mxu0
      %v618 = vadd.f32 %v430, %v617
      %619 = vmatmul.f32.gmra.mxu0 %v517
      %v620 = vpop.f32.mrf.mxu0
      %v621 = vadd.f32 %v433, %v620
      %622 = vmatmul.f32.gmra.mxu0 %v520
      %v623 = vpop.f32.mrf.mxu0
      %v624 = vadd.f32 %v436, %v623
      %625 = vmatmul.f32.gmra.mxu0 %v523
      %v626 = vpop.f32.mrf.mxu0
      %v627 = vadd.f32 %v439, %v626
      %628 = vmatmul.f32.gmra.mxu0 %v526
      %v629 = vpop.f32.mrf.mxu0
      %v630 = vadd.f32 %v442, %v629
      %631 = vmatmul.f32.gmra.mxu0 %v529
      %v632 = vpop.f32.mrf.mxu0
      %v633 = vadd.f32 %v445, %v632
      %634 = vmatmul.f32.gmra.mxu0 %v532
      %v635 = vpop.f32.mrf.mxu0
      %v636 = vadd.f32 %v448, %v635
      %637 = vmatmul.f32.gmra.mxu0 %v535
      %v638 = vpop.f32.mrf.mxu0
      %v639 = vadd.f32 %v451, %v638
      %640 = vmatmul.f32.gmra.mxu0 %v538
      %v641 = vpop.f32.mrf.mxu0
      %v642 = vadd.f32 %v454, %v641
      %643 = vmatmul.f32.gmra.mxu0 %v541
      %v644 = vpop.f32.mrf.mxu0
      %v645 = vadd.f32 %v457, %v644
      %646 = vmatmul.f32.gmra.mxu0 %v544
      %v647 = vpop.f32.mrf.mxu0
      %v648 = vadd.f32 %v460, %v647
      %649 = vmatmul.f32.gmra.mxu0 %v547
      %v650 = vpop.f32.mrf.mxu0
      %v651 = vadd.f32 %v463, %v650
      %652 = vmatmul.f32.gmra.mxu0 %v550
      %v653 = vpop.f32.mrf.mxu0
      %v654 = vadd.f32 %v466, %v653
      %655 = vmatmul.f32.gmra.mxu0 %v553
      %v656 = vpop.f32.mrf.mxu0
      %v657 = vadd.f32 %v469, %v656
      %658 = vdwg.mxu0
      %v659 = vld [vmem:[%s206 + $0x2] sm:$0xff]
      %v660 = vld [vmem:[%s206 + $0xa] sm:$0xff]
      %v661 = vld [vmem:[%s206 + $0x12] sm:$0xff]
      %v662 = vld [vmem:[%s206 + $0x1a] sm:$0xff]
      %v663 = vld [vmem:[%s206 + $0x22] sm:$0xff]
      %v664 = vld [vmem:[%s206 + $0x2a] sm:$0xff]
      %v665 = vld [vmem:[%s206 + $0x32] sm:$0xff]
      %v666 = vld [vmem:[%s206 + $0x3a] sm:$0xff]
      %v667 = vld [vmem:[%s206 + $0x42] sm:$0xff]
      %v668 = vld [vmem:[%s206 + $0x4a] sm:$0xff]
      %v669 = vld [vmem:[%s206 + $0x52] sm:$0xff]
      %v670 = vld [vmem:[%s206 + $0x5a] sm:$0xff]
      %v671 = vld [vmem:[%s206 + $0x62] sm:$0xff]
      %v672 = vld [vmem:[%s206 + $0x6a] sm:$0xff]
      %v673 = vld [vmem:[%s206 + $0x72] sm:$0xff]
      %v674 = vld [vmem:[%s206 + $0x7a] sm:$0xff]
      %v675 = vld [vmem:[%s206 + $0x82] sm:$0xff]
      %v676 = vld [vmem:[%s206 + $0x8a] sm:$0xff]
      %v677 = vld [vmem:[%s206 + $0x92] sm:$0xff]
      %v678 = vld [vmem:[%s206 + $0x9a] sm:$0xff]
      %v679 = vld [vmem:[%s206 + $0xa2] sm:$0xff]
      %v680 = vld [vmem:[%s206 + $0xaa] sm:$0xff]
      %v681 = vld [vmem:[%s206 + $0xb2] sm:$0xff]
      %v682 = vld [vmem:[%s206 + $0xba] sm:$0xff]
      %v683 = vld [vmem:[%s206 + $0xc2] sm:$0xff]
      %v684 = vld [vmem:[%s206 + $0xca] sm:$0xff]
      %v685 = vld [vmem:[%s206 + $0xd2] sm:$0xff]
      %v686 = vld [vmem:[%s206 + $0xda] sm:$0xff]
      %s687 = scalar_lea.vmem %s210, 8
      %v688 = vld [vmem:[%s687] sm:$0xf]
      %v690 = vsel %vm281, %v659, 0
      %v693 = vsel %vm281, %v660, 0
      %v696 = vsel %vm281, %v661, 0
      %v699 = vsel %vm281, %v662, 0
      %v702 = vsel %vm281, %v663, 0
      %v705 = vsel %vm281, %v664, 0
      %v708 = vsel %vm281, %v665, 0
      %v711 = vsel %vm281, %v666, 0
      %v714 = vsel %vm281, %v667, 0
      %v717 = vsel %vm281, %v668, 0
      %v720 = vsel %vm281, %v669, 0
      %v723 = vsel %vm281, %v670, 0
      %v726 = vsel %vm281, %v671, 0
      %v729 = vsel %vm281, %v672, 0
      %v732 = vsel %vm281, %v673, 0
      %v735 = vsel %vm281, %v674, 0
      %v738 = vsel %vm281, %v675, 0
      %v741 = vsel %vm281, %v676, 0
      %v744 = vsel %vm281, %v677, 0
      %v747 = vsel %vm281, %v678, 0
      %v750 = vsel %vm281, %v679, 0
      %v753 = vsel %vm281, %v680, 0
      %v756 = vsel %vm281, %v681, 0
      %v759 = vsel %vm281, %v682, 0
      %v762 = vsel %vm281, %v683, 0
      %v765 = vsel %vm281, %v684, 0
      %v768 = vsel %vm281, %v685, 0
      %v771 = vsel %vm281, %v686, 0
      %v774 = vsel %vm366, %v688, 0
      %776 = vmatpush.msra.mxu0 0.0
      %777 = vmatpush.msra.mxu0 0.0
      %778 = vmatpush.msra.mxu0 0.0
      %779 = vmatpush.msra.mxu0 0.0
      %780 = vmatpush.msra.mxu0 0.0
      %781 = vmatpush.msra.mxu0 0.0
      %782 = vmatpush.msra.mxu0 0.0
      %783 = vmatpush.msra.mxu0 0.0
      %784 = vmatpush.msra.mxu0 0.0
      %785 = vmatpush.msra.mxu0 0.0
      %786 = vmatpush.msra.mxu0 0.0
      %787 = vmatpush.msra.mxu0 0.0
      %788 = vmatpush.msra.mxu0 0.0
      %789 = vmatpush.msra.mxu0 0.0
      %790 = vmatpush.msra.mxu0 0.0
      %791 = vmatpush.msra.mxu0 %v774
      %792 = vmatmul.f32.gmra.mxu0 %v690
      %v793 = vpop.f32.mrf.mxu0
      %v794 = vadd.f32 0.0, %v793
      %795 = vmatmul.f32.gmra.mxu0 %v693
      %v796 = vpop.f32.mrf.mxu0
      %v797 = vadd.f32 0.0, %v796
      %798 = vmatmul.f32.gmra.mxu0 %v696
      %v799 = vpop.f32.mrf.mxu0
      %v800 = vadd.f32 0.0, %v799
      %801 = vmatmul.f32.gmra.mxu0 %v699
      %v802 = vpop.f32.mrf.mxu0
      %v803 = vadd.f32 0.0, %v802
      %804 = vmatmul.f32.gmra.mxu0 %v702
      %v805 = vpop.f32.mrf.mxu0
      %v806 = vadd.f32 0.0, %v805
      %807 = vmatmul.f32.gmra.mxu0 %v705
      %v808 = vpop.f32.mrf.mxu0
      %v809 = vadd.f32 0.0, %v808
      %810 = vmatmul.f32.gmra.mxu0 %v708
      %v811 = vpop.f32.mrf.mxu0
      %v812 = vadd.f32 0.0, %v811
      %813 = vmatmul.f32.gmra.mxu0 %v711
      %v814 = vpop.f32.mrf.mxu0
      %v815 = vadd.f32 0.0, %v814
      %816 = vmatmul.f32.gmra.mxu0 %v714
      %v817 = vpop.f32.mrf.mxu0
      %v818 = vadd.f32 0.0, %v817
      %819 = vmatmul.f32.gmra.mxu0 %v717
      %v820 = vpop.f32.mrf.mxu0
      %v821 = vadd.f32 0.0, %v820
      %822 = vmatmul.f32.gmra.mxu0 %v720
      %v823 = vpop.f32.mrf.mxu0
      %v824 = vadd.f32 0.0, %v823
      %825 = vmatmul.f32.gmra.mxu0 %v723
      %v826 = vpop.f32.mrf.mxu0
      %v827 = vadd.f32 0.0, %v826
      %828 = vmatmul.f32.gmra.mxu0 %v726
      %v829 = vpop.f32.mrf.mxu0
      %v830 = vadd.f32 0.0, %v829
      %831 = vmatmul.f32.gmra.mxu0 %v729
      %v832 = vpop.f32.mrf.mxu0
      %v833 = vadd.f32 0.0, %v832
      %834 = vmatmul.f32.gmra.mxu0 %v732
      %v835 = vpop.f32.mrf.mxu0
      %v836 = vadd.f32 0.0, %v835
      %837 = vmatmul.f32.gmra.mxu0 %v735
      %v838 = vpop.f32.mrf.mxu0
      %v839 = vadd.f32 0.0, %v838
      %840 = vmatmul.f32.gmra.mxu0 %v738
      %v841 = vpop.f32.mrf.mxu0
      %v842 = vadd.f32 0.0, %v841
      %843 = vmatmul.f32.gmra.mxu0 %v741
      %v844 = vpop.f32.mrf.mxu0
      %v845 = vadd.f32 0.0, %v844
      %846 = vmatmul.f32.gmra.mxu0 %v744
      %v847 = vpop.f32.mrf.mxu0
      %v848 = vadd.f32 0.0, %v847
      %849 = vmatmul.f32.gmra.mxu0 %v747
      %v850 = vpop.f32.mrf.mxu0
      %v851 = vadd.f32 0.0, %v850
      %852 = vmatmul.f32.gmra.mxu0 %v750
      %v853 = vpop.f32.mrf.mxu0
      %v854 = vadd.f32 0.0, %v853
      %855 = vmatmul.f32.gmra.mxu0 %v753
      %v856 = vpop.f32.mrf.mxu0
      %v857 = vadd.f32 0.0, %v856
      %858 = vmatmul.f32.gmra.mxu0 %v756
      %v859 = vpop.f32.mrf.mxu0
      %v860 = vadd.f32 0.0, %v859
      %861 = vmatmul.f32.gmra.mxu0 %v759
      %v862 = vpop.f32.mrf.mxu0
      %v863 = vadd.f32 0.0, %v862
      %864 = vmatmul.f32.gmra.mxu0 %v762
      %v865 = vpop.f32.mrf.mxu0
      %v866 = vadd.f32 0.0, %v865
      %867 = vmatmul.f32.gmra.mxu0 %v765
      %v868 = vpop.f32.mrf.mxu0
      %v869 = vadd.f32 0.0, %v868
      %870 = vmatmul.f32.gmra.mxu0 %v768
      %v871 = vpop.f32.mrf.mxu0
      %v872 = vadd.f32 0.0, %v871
      %873 = vmatmul.f32.gmra.mxu0 %v771
      %v874 = vpop.f32.mrf.mxu0
      %v875 = vadd.f32 0.0, %v874
      %876 = vdwg.mxu0
      %v877 = vadd.f32 %v576, %v794
      %v878 = vadd.f32 %v579, %v797
      %v879 = vadd.f32 %v582, %v800
      %v880 = vadd.f32 %v585, %v803
      %v881 = vadd.f32 %v588, %v806
      %v882 = vadd.f32 %v591, %v809
      %v883 = vadd.f32 %v594, %v812
      %v884 = vadd.f32 %v597, %v815
      %v885 = vadd.f32 %v600, %v818
      %v886 = vadd.f32 %v603, %v821
      %v887 = vadd.f32 %v606, %v824
      %v888 = vadd.f32 %v609, %v827
      %v889 = vadd.f32 %v612, %v830
      %v890 = vadd.f32 %v615, %v833
      %v891 = vadd.f32 %v618, %v836
      %v892 = vadd.f32 %v621, %v839
      %v893 = vadd.f32 %v624, %v842
      %v894 = vadd.f32 %v627, %v845
      %v895 = vadd.f32 %v630, %v848
      %v896 = vadd.f32 %v633, %v851
      %v897 = vadd.f32 %v636, %v854
      %v898 = vadd.f32 %v639, %v857
      %v899 = vadd.f32 %v642, %v860
      %v900 = vadd.f32 %v645, %v863
      %v901 = vadd.f32 %v648, %v866
      %v902 = vadd.f32 %v651, %v869
      %v903 = vadd.f32 %v654, %v872
      %v904 = vadd.f32 %v657, %v875
      %v905 = vld [vmem:[%s206 + $0x10] sm:$0xff]
      %v906 = vld [vmem:[%s206 + $0x18] sm:$0xff]
      %v907 = vld [vmem:[%s206 + $0x20] sm:$0xff]
      %v908 = vld [vmem:[%s206 + $0x28] sm:$0xff]
      %v909 = vld [vmem:[%s206 + $0x30] sm:$0xff]
      %v910 = vld [vmem:[%s206 + $0x38] sm:$0xff]
      %v911 = vld [vmem:[%s206 + $0x40] sm:$0xff]
      %v912 = vld [vmem:[%s206 + $0x48] sm:$0xff]
      %v913 = vld [vmem:[%s206 + $0x50] sm:$0xff]
      %v914 = vld [vmem:[%s206 + $0x58] sm:$0xff]
      %v915 = vld [vmem:[%s206 + $0x60] sm:$0xff]
      %v916 = vld [vmem:[%s206 + $0x68] sm:$0xff]
      %v917 = vld [vmem:[%s206 + $0x70] sm:$0xff]
      %v918 = vld [vmem:[%s206 + $0x78] sm:$0xff]
      %v919 = vld [vmem:[%s206 + $0x80] sm:$0xff]
      %v920 = vld [vmem:[%s206 + $0x88] sm:$0xff]
      %v921 = vld [vmem:[%s206 + $0x90] sm:$0xff]
      %v922 = vld [vmem:[%s206 + $0x98] sm:$0xff]
      %v923 = vld [vmem:[%s206 + $0xa0] sm:$0xff]
      %v924 = vld [vmem:[%s206 + $0xa8] sm:$0xff]
      %v925 = vld [vmem:[%s206 + $0xb0] sm:$0xff]
      %v926 = vld [vmem:[%s206 + $0xb8] sm:$0xff]
      %v927 = vld [vmem:[%s206 + $0xc0] sm:$0xff]
      %v928 = vld [vmem:[%s206 + $0xc8] sm:$0xff]
      %v929 = vld [vmem:[%s206 + $0xd0] sm:$0xff]
      %v930 = vld [vmem:[%s206 + $0xd8] sm:$0xff]
      %v931 = vld [vmem:[%s206 + $0xe0] sm:$0xff]
      %v932 = vld [vmem:[%s206 + $0xe8] sm:$0xff]
      %s933 = scalar_lea.vmem %s210, 12
      %v934 = vld [vmem:[%s933] sm:$0xf]
      %v936 = vsel %vm281, %v905, 0
      %v939 = vsel %vm281, %v906, 0
      %v942 = vsel %vm281, %v907, 0
      %v945 = vsel %vm281, %v908, 0
      %v948 = vsel %vm281, %v909, 0
      %v951 = vsel %vm281, %v910, 0
      %v954 = vsel %vm281, %v911, 0
      %v957 = vsel %vm281, %v912, 0
      %v960 = vsel %vm281, %v913, 0
      %v963 = vsel %vm281, %v914, 0
      %v966 = vsel %vm281, %v915, 0
      %v969 = vsel %vm281, %v916, 0
      %v972 = vsel %vm281, %v917, 0
      %v975 = vsel %vm281, %v918, 0
      %v978 = vsel %vm281, %v919, 0
      %v981 = vsel %vm281, %v920, 0
      %v984 = vsel %vm281, %v921, 0
      %v987 = vsel %vm281, %v922, 0
      %v990 = vsel %vm281, %v923, 0
      %v993 = vsel %vm281, %v924, 0
      %v996 = vsel %vm281, %v925, 0
      %v999 = vsel %vm281, %v926, 0
      %v1002 = vsel %vm281, %v927, 0
      %v1005 = vsel %vm281, %v928, 0
      %v1008 = vsel %vm281, %v929, 0
      %v1011 = vsel %vm281, %v930, 0
      %v1014 = vsel %vm281, %v931, 0
      %v1017 = vsel %vm281, %v932, 0
      %v1020 = vsel %vm366, %v934, 0
      %1022 = vmatpush.msra.mxu0 0.0
      %1023 = vmatpush.msra.mxu0 0.0
      %1024 = vmatpush.msra.mxu0 0.0
      %1025 = vmatpush.msra.mxu0 0.0
      %1026 = vmatpush.msra.mxu0 0.0
      %1027 = vmatpush.msra.mxu0 0.0
      %1028 = vmatpush.msra.mxu0 0.0
      %1029 = vmatpush.msra.mxu0 0.0
      %1030 = vmatpush.msra.mxu0 0.0
      %1031 = vmatpush.msra.mxu0 0.0
      %1032 = vmatpush.msra.mxu0 0.0
      %1033 = vmatpush.msra.mxu0 0.0
      %1034 = vmatpush.msra.mxu0 0.0
      %1035 = vmatpush.msra.mxu0 0.0
      %1036 = vmatpush.msra.mxu0 0.0
      %1037 = vmatpush.msra.mxu0 %v1020
      %1038 = vmatmul.f32.gmra.mxu0 %v936
      %v1039 = vpop.f32.mrf.mxu0
      %v1040 = vadd.f32 0.0, %v1039
      %1041 = vmatmul.f32.gmra.mxu0 %v939
      %v1042 = vpop.f32.mrf.mxu0
      %v1043 = vadd.f32 0.0, %v1042
      %1044 = vmatmul.f32.gmra.mxu0 %v942
      %v1045 = vpop.f32.mrf.mxu0
      %v1046 = vadd.f32 0.0, %v1045
      %1047 = vmatmul.f32.gmra.mxu0 %v945
      %v1048 = vpop.f32.mrf.mxu0
      %v1049 = vadd.f32 0.0, %v1048
      %1050 = vmatmul.f32.gmra.mxu0 %v948
      %v1051 = vpop.f32.mrf.mxu0
      %v1052 = vadd.f32 0.0, %v1051
      %1053 = vmatmul.f32.gmra.mxu0 %v951
      %v1054 = vpop.f32.mrf.mxu0
      %v1055 = vadd.f32 0.0, %v1054
      %1056 = vmatmul.f32.gmra.mxu0 %v954
      %v1057 = vpop.f32.mrf.mxu0
      %v1058 = vadd.f32 0.0, %v1057
      %1059 = vmatmul.f32.gmra.mxu0 %v957
      %v1060 = vpop.f32.mrf.mxu0
      %v1061 = vadd.f32 0.0, %v1060
      %1062 = vmatmul.f32.gmra.mxu0 %v960
      %v1063 = vpop.f32.mrf.mxu0
      %v1064 = vadd.f32 0.0, %v1063
      %1065 = vmatmul.f32.gmra.mxu0 %v963
      %v1066 = vpop.f32.mrf.mxu0
      %v1067 = vadd.f32 0.0, %v1066
      %1068 = vmatmul.f32.gmra.mxu0 %v966
      %v1069 = vpop.f32.mrf.mxu0
      %v1070 = vadd.f32 0.0, %v1069
      %1071 = vmatmul.f32.gmra.mxu0 %v969
      %v1072 = vpop.f32.mrf.mxu0
      %v1073 = vadd.f32 0.0, %v1072
      %1074 = vmatmul.f32.gmra.mxu0 %v972
      %v1075 = vpop.f32.mrf.mxu0
      %v1076 = vadd.f32 0.0, %v1075
      %1077 = vmatmul.f32.gmra.mxu0 %v975
      %v1078 = vpop.f32.mrf.mxu0
      %v1079 = vadd.f32 0.0, %v1078
      %1080 = vmatmul.f32.gmra.mxu0 %v978
      %v1081 = vpop.f32.mrf.mxu0
      %v1082 = vadd.f32 0.0, %v1081
      %1083 = vmatmul.f32.gmra.mxu0 %v981
      %v1084 = vpop.f32.mrf.mxu0
      %v1085 = vadd.f32 0.0, %v1084
      %1086 = vmatmul.f32.gmra.mxu0 %v984
      %v1087 = vpop.f32.mrf.mxu0
      %v1088 = vadd.f32 0.0, %v1087
      %1089 = vmatmul.f32.gmra.mxu0 %v987
      %v1090 = vpop.f32.mrf.mxu0
      %v1091 = vadd.f32 0.0, %v1090
      %1092 = vmatmul.f32.gmra.mxu0 %v990
      %v1093 = vpop.f32.mrf.mxu0
      %v1094 = vadd.f32 0.0, %v1093
      %1095 = vmatmul.f32.gmra.mxu0 %v993
      %v1096 = vpop.f32.mrf.mxu0
      %v1097 = vadd.f32 0.0, %v1096
      %1098 = vmatmul.f32.gmra.mxu0 %v996
      %v1099 = vpop.f32.mrf.mxu0
      %v1100 = vadd.f32 0.0, %v1099
      %1101 = vmatmul.f32.gmra.mxu0 %v999
      %v1102 = vpop.f32.mrf.mxu0
      %v1103 = vadd.f32 0.0, %v1102
      %1104 = vmatmul.f32.gmra.mxu0 %v1002
      %v1105 = vpop.f32.mrf.mxu0
      %v1106 = vadd.f32 0.0, %v1105
      %1107 = vmatmul.f32.gmra.mxu0 %v1005
      %v1108 = vpop.f32.mrf.mxu0
      %v1109 = vadd.f32 0.0, %v1108
      %1110 = vmatmul.f32.gmra.mxu0 %v1008
      %v1111 = vpop.f32.mrf.mxu0
      %v1112 = vadd.f32 0.0, %v1111
      %1113 = vmatmul.f32.gmra.mxu0 %v1011
      %v1114 = vpop.f32.mrf.mxu0
      %v1115 = vadd.f32 0.0, %v1114
      %1116 = vmatmul.f32.gmra.mxu0 %v1014
      %v1117 = vpop.f32.mrf.mxu0
      %v1118 = vadd.f32 0.0, %v1117
      %1119 = vmatmul.f32.gmra.mxu0 %v1017
      %v1120 = vpop.f32.mrf.mxu0
      %v1121 = vadd.f32 0.0, %v1120
      %1122 = vdwg.mxu0
      %v1123 = vadd.f32 %v877, %v1040
      %v1124 = vadd.f32 %v878, %v1043
      %v1125 = vadd.f32 %v879, %v1046
      %v1126 = vadd.f32 %v880, %v1049
      %v1127 = vadd.f32 %v881, %v1052
      %v1128 = vadd.f32 %v882, %v1055
      %v1129 = vadd.f32 %v883, %v1058
      %v1130 = vadd.f32 %v884, %v1061
      %v1131 = vadd.f32 %v885, %v1064
      %v1132 = vadd.f32 %v886, %v1067
      %v1133 = vadd.f32 %v887, %v1070
      %v1134 = vadd.f32 %v888, %v1073
      %v1135 = vadd.f32 %v889, %v1076
      %v1136 = vadd.f32 %v890, %v1079
      %v1137 = vadd.f32 %v891, %v1082
      %v1138 = vadd.f32 %v892, %v1085
      %v1139 = vadd.f32 %v893, %v1088
      %v1140 = vadd.f32 %v894, %v1091
      %v1141 = vadd.f32 %v895, %v1094
      %v1142 = vadd.f32 %v896, %v1097
      %v1143 = vadd.f32 %v897, %v1100
      %v1144 = vadd.f32 %v898, %v1103
      %v1145 = vadd.f32 %v899, %v1106
      %v1146 = vadd.f32 %v900, %v1109
      %v1147 = vadd.f32 %v901, %v1112
      %v1148 = vadd.f32 %v902, %v1115
      %v1149 = vadd.f32 %v903, %v1118
      %v1150 = vadd.f32 %v904, %v1121
      %v1151 = vld [vmem:[%s206 + $0x11] sm:$0xff]
      %v1152 = vld [vmem:[%s206 + $0x19] sm:$0xff]
      %v1153 = vld [vmem:[%s206 + $0x21] sm:$0xff]
      %v1154 = vld [vmem:[%s206 + $0x29] sm:$0xff]
      %v1155 = vld [vmem:[%s206 + $0x31] sm:$0xff]
      %v1156 = vld [vmem:[%s206 + $0x39] sm:$0xff]
      %v1157 = vld [vmem:[%s206 + $0x41] sm:$0xff]
      %v1158 = vld [vmem:[%s206 + $0x49] sm:$0xff]
      %v1159 = vld [vmem:[%s206 + $0x51] sm:$0xff]
      %v1160 = vld [vmem:[%s206 + $0x59] sm:$0xff]
      %v1161 = vld [vmem:[%s206 + $0x61] sm:$0xff]
      %v1162 = vld [vmem:[%s206 + $0x69] sm:$0xff]
      %v1163 = vld [vmem:[%s206 + $0x71] sm:$0xff]
      %v1164 = vld [vmem:[%s206 + $0x79] sm:$0xff]
      %v1165 = vld [vmem:[%s206 + $0x81] sm:$0xff]
      %v1166 = vld [vmem:[%s206 + $0x89] sm:$0xff]
      %v1167 = vld [vmem:[%s206 + $0x91] sm:$0xff]
      %v1168 = vld [vmem:[%s206 + $0x99] sm:$0xff]
      %v1169 = vld [vmem:[%s206 + $0xa1] sm:$0xff]
      %v1170 = vld [vmem:[%s206 + $0xa9] sm:$0xff]
      %v1171 = vld [vmem:[%s206 + $0xb1] sm:$0xff]
      %v1172 = vld [vmem:[%s206 + $0xb9] sm:$0xff]
      %v1173 = vld [vmem:[%s206 + $0xc1] sm:$0xff]
      %v1174 = vld [vmem:[%s206 + $0xc9] sm:$0xff]
      %v1175 = vld [vmem:[%s206 + $0xd1] sm:$0xff]
      %v1176 = vld [vmem:[%s206 + $0xd9] sm:$0xff]
      %v1177 = vld [vmem:[%s206 + $0xe1] sm:$0xff]
      %v1178 = vld [vmem:[%s206 + $0xe9] sm:$0xff]
      %s1179 = scalar_lea.vmem %s210, 16
      %v1180 = vld [vmem:[%s1179] sm:$0xf]
      %v1182 = vsel %vm281, %v1151, 0
      %v1185 = vsel %vm281, %v1152, 0
      %v1188 = vsel %vm281, %v1153, 0
      %v1191 = vsel %vm281, %v1154, 0
      %v1194 = vsel %vm281, %v1155, 0
      %v1197 = vsel %vm281, %v1156, 0
      %v1200 = vsel %vm281, %v1157, 0
      %v1203 = vsel %vm281, %v1158, 0
      %v1206 = vsel %vm281, %v1159, 0
      %v1209 = vsel %vm281, %v1160, 0
      %v1212 = vsel %vm281, %v1161, 0
      %v1215 = vsel %vm281, %v1162, 0
      %v1218 = vsel %vm281, %v1163, 0
      %v1221 = vsel %vm281, %v1164, 0
      %v1224 = vsel %vm281, %v1165, 0
      %v1227 = vsel %vm281, %v1166, 0
      %v1230 = vsel %vm281, %v1167, 0
      %v1233 = vsel %vm281, %v1168, 0
      %v1236 = vsel %vm281, %v1169, 0
      %v1239 = vsel %vm281, %v1170, 0
      %v1242 = vsel %vm281, %v1171, 0
      %v1245 = vsel %vm281, %v1172, 0
      %v1248 = vsel %vm281, %v1173, 0
      %v1251 = vsel %vm281, %v1174, 0
      %v1254 = vsel %vm281, %v1175, 0
      %v1257 = vsel %vm281, %v1176, 0
      %v1260 = vsel %vm281, %v1177, 0
      %v1263 = vsel %vm281, %v1178, 0
      %v1266 = vsel %vm366, %v1180, 0
      %1268 = vmatpush.msra.mxu0 0.0
      %1269 = vmatpush.msra.mxu0 0.0
      %1270 = vmatpush.msra.mxu0 0.0
      %1271 = vmatpush.msra.mxu0 0.0
      %1272 = vmatpush.msra.mxu0 0.0
      %1273 = vmatpush.msra.mxu0 0.0
      %1274 = vmatpush.msra.mxu0 0.0
      %1275 = vmatpush.msra.mxu0 0.0
      %1276 = vmatpush.msra.mxu0 0.0
      %1277 = vmatpush.msra.mxu0 0.0
      %1278 = vmatpush.msra.mxu0 0.0
      %1279 = vmatpush.msra.mxu0 0.0
      %1280 = vmatpush.msra.mxu0 0.0
      %1281 = vmatpush.msra.mxu0 0.0
      %1282 = vmatpush.msra.mxu0 0.0
      %1283 = vmatpush.msra.mxu0 %v1266
      %1284 = vmatmul.f32.gmra.mxu0 %v1182
      %v1285 = vpop.f32.mrf.mxu0
      %v1286 = vadd.f32 0.0, %v1285
      %1287 = vmatmul.f32.gmra.mxu0 %v1185
      %v1288 = vpop.f32.mrf.mxu0
      %v1289 = vadd.f32 0.0, %v1288
      %1290 = vmatmul.f32.gmra.mxu0 %v1188
      %v1291 = vpop.f32.mrf.mxu0
      %v1292 = vadd.f32 0.0, %v1291
      %1293 = vmatmul.f32.gmra.mxu0 %v1191
      %v1294 = vpop.f32.mrf.mxu0
      %v1295 = vadd.f32 0.0, %v1294
      %1296 = vmatmul.f32.gmra.mxu0 %v1194
      %v1297 = vpop.f32.mrf.mxu0
      %v1298 = vadd.f32 0.0, %v1297
      %1299 = vmatmul.f32.gmra.mxu0 %v1197
      %v1300 = vpop.f32.mrf.mxu0
      %v1301 = vadd.f32 0.0, %v1300
      %1302 = vmatmul.f32.gmra.mxu0 %v1200
      %v1303 = vpop.f32.mrf.mxu0
      %v1304 = vadd.f32 0.0, %v1303
      %1305 = vmatmul.f32.gmra.mxu0 %v1203
      %v1306 = vpop.f32.mrf.mxu0
      %v1307 = vadd.f32 0.0, %v1306
      %1308 = vmatmul.f32.gmra.mxu0 %v1206
      %v1309 = vpop.f32.mrf.mxu0
      %v1310 = vadd.f32 0.0, %v1309
      %1311 = vmatmul.f32.gmra.mxu0 %v1209
      %v1312 = vpop.f32.mrf.mxu0
      %v1313 = vadd.f32 0.0, %v1312
      %1314 = vmatmul.f32.gmra.mxu0 %v1212
      %v1315 = vpop.f32.mrf.mxu0
      %v1316 = vadd.f32 0.0, %v1315
      %1317 = vmatmul.f32.gmra.mxu0 %v1215
      %v1318 = vpop.f32.mrf.mxu0
      %v1319 = vadd.f32 0.0, %v1318
      %1320 = vmatmul.f32.gmra.mxu0 %v1218
      %v1321 = vpop.f32.mrf.mxu0
      %v1322 = vadd.f32 0.0, %v1321
      %1323 = vmatmul.f32.gmra.mxu0 %v1221
      %v1324 = vpop.f32.mrf.mxu0
      %v1325 = vadd.f32 0.0, %v1324
      %1326 = vmatmul.f32.gmra.mxu0 %v1224
      %v1327 = vpop.f32.mrf.mxu0
      %v1328 = vadd.f32 0.0, %v1327
      %1329 = vmatmul.f32.gmra.mxu0 %v1227
      %v1330 = vpop.f32.mrf.mxu0
      %v1331 = vadd.f32 0.0, %v1330
      %1332 = vmatmul.f32.gmra.mxu0 %v1230
      %v1333 = vpop.f32.mrf.mxu0
      %v1334 = vadd.f32 0.0, %v1333
      %1335 = vmatmul.f32.gmra.mxu0 %v1233
      %v1336 = vpop.f32.mrf.mxu0
      %v1337 = vadd.f32 0.0, %v1336
      %1338 = vmatmul.f32.gmra.mxu0 %v1236
      %v1339 = vpop.f32.mrf.mxu0
      %v1340 = vadd.f32 0.0, %v1339
      %1341 = vmatmul.f32.gmra.mxu0 %v1239
      %v1342 = vpop.f32.mrf.mxu0
      %v1343 = vadd.f32 0.0, %v1342
      %1344 = vmatmul.f32.gmra.mxu0 %v1242
      %v1345 = vpop.f32.mrf.mxu0
      %v1346 = vadd.f32 0.0, %v1345
      %1347 = vmatmul.f32.gmra.mxu0 %v1245
      %v1348 = vpop.f32.mrf.mxu0
      %v1349 = vadd.f32 0.0, %v1348
      %1350 = vmatmul.f32.gmra.mxu0 %v1248
      %v1351 = vpop.f32.mrf.mxu0
      %v1352 = vadd.f32 0.0, %v1351
      %1353 = vmatmul.f32.gmra.mxu0 %v1251
      %v1354 = vpop.f32.mrf.mxu0
      %v1355 = vadd.f32 0.0, %v1354
      %1356 = vmatmul.f32.gmra.mxu0 %v1254
      %v1357 = vpop.f32.mrf.mxu0
      %v1358 = vadd.f32 0.0, %v1357
      %1359 = vmatmul.f32.gmra.mxu0 %v1257
      %v1360 = vpop.f32.mrf.mxu0
      %v1361 = vadd.f32 0.0, %v1360
      %1362 = vmatmul.f32.gmra.mxu0 %v1260
      %v1363 = vpop.f32.mrf.mxu0
      %v1364 = vadd.f32 0.0, %v1363
      %1365 = vmatmul.f32.gmra.mxu0 %v1263
      %v1366 = vpop.f32.mrf.mxu0
      %v1367 = vadd.f32 0.0, %v1366
      %1368 = vdwg.mxu0
      %v1369 = vadd.f32 %v1123, %v1286
      %v1370 = vadd.f32 %v1124, %v1289
      %v1371 = vadd.f32 %v1125, %v1292
      %v1372 = vadd.f32 %v1126, %v1295
      %v1373 = vadd.f32 %v1127, %v1298
      %v1374 = vadd.f32 %v1128, %v1301
      %v1375 = vadd.f32 %v1129, %v1304
      %v1376 = vadd.f32 %v1130, %v1307
      %v1377 = vadd.f32 %v1131, %v1310
      %v1378 = vadd.f32 %v1132, %v1313
      %v1379 = vadd.f32 %v1133, %v1316
      %v1380 = vadd.f32 %v1134, %v1319
      %v1381 = vadd.f32 %v1135, %v1322
      %v1382 = vadd.f32 %v1136, %v1325
      %v1383 = vadd.f32 %v1137, %v1328
      %v1384 = vadd.f32 %v1138, %v1331
      %v1385 = vadd.f32 %v1139, %v1334
      %v1386 = vadd.f32 %v1140, %v1337
      %v1387 = vadd.f32 %v1141, %v1340
      %v1388 = vadd.f32 %v1142, %v1343
      %v1389 = vadd.f32 %v1143, %v1346
      %v1390 = vadd.f32 %v1144, %v1349
      %v1391 = vadd.f32 %v1145, %v1352
      %v1392 = vadd.f32 %v1146, %v1355
      %v1393 = vadd.f32 %v1147, %v1358
      %v1394 = vadd.f32 %v1148, %v1361
      %v1395 = vadd.f32 %v1149, %v1364
      %v1396 = vadd.f32 %v1150, %v1367
      %v1397 = vld [vmem:[%s206 + $0x12] sm:$0xff]
      %v1398 = vld [vmem:[%s206 + $0x1a] sm:$0xff]
      %v1399 = vld [vmem:[%s206 + $0x22] sm:$0xff]
      %v1400 = vld [vmem:[%s206 + $0x2a] sm:$0xff]
      %v1401 = vld [vmem:[%s206 + $0x32] sm:$0xff]
      %v1402 = vld [vmem:[%s206 + $0x3a] sm:$0xff]
      %v1403 = vld [vmem:[%s206 + $0x42] sm:$0xff]
      %v1404 = vld [vmem:[%s206 + $0x4a] sm:$0xff]
      %v1405 = vld [vmem:[%s206 + $0x52] sm:$0xff]
      %v1406 = vld [vmem:[%s206 + $0x5a] sm:$0xff]
      %v1407 = vld [vmem:[%s206 + $0x62] sm:$0xff]
      %v1408 = vld [vmem:[%s206 + $0x6a] sm:$0xff]
      %v1409 = vld [vmem:[%s206 + $0x72] sm:$0xff]
      %v1410 = vld [vmem:[%s206 + $0x7a] sm:$0xff]
      %v1411 = vld [vmem:[%s206 + $0x82] sm:$0xff]
      %v1412 = vld [vmem:[%s206 + $0x8a] sm:$0xff]
      %v1413 = vld [vmem:[%s206 + $0x92] sm:$0xff]
      %v1414 = vld [vmem:[%s206 + $0x9a] sm:$0xff]
      %v1415 = vld [vmem:[%s206 + $0xa2] sm:$0xff]
      %v1416 = vld [vmem:[%s206 + $0xaa] sm:$0xff]
      %v1417 = vld [vmem:[%s206 + $0xb2] sm:$0xff]
      %v1418 = vld [vmem:[%s206 + $0xba] sm:$0xff]
      %v1419 = vld [vmem:[%s206 + $0xc2] sm:$0xff]
      %v1420 = vld [vmem:[%s206 + $0xca] sm:$0xff]
      %v1421 = vld [vmem:[%s206 + $0xd2] sm:$0xff]
      %v1422 = vld [vmem:[%s206 + $0xda] sm:$0xff]
      %v1423 = vld [vmem:[%s206 + $0xe2] sm:$0xff]
      %v1424 = vld [vmem:[%s206 + $0xea] sm:$0xff]
      %s1425 = scalar_lea.vmem %s210, 20
      %v1426 = vld [vmem:[%s1425] sm:$0xf]
      %v1428 = vsel %vm281, %v1397, 0
      %v1431 = vsel %vm281, %v1398, 0
      %v1434 = vsel %vm281, %v1399, 0
      %v1437 = vsel %vm281, %v1400, 0
      %v1440 = vsel %vm281, %v1401, 0
      %v1443 = vsel %vm281, %v1402, 0
      %v1446 = vsel %vm281, %v1403, 0
      %v1449 = vsel %vm281, %v1404, 0
      %v1452 = vsel %vm281, %v1405, 0
      %v1455 = vsel %vm281, %v1406, 0
      %v1458 = vsel %vm281, %v1407, 0
      %v1461 = vsel %vm281, %v1408, 0
      %v1464 = vsel %vm281, %v1409, 0
      %v1467 = vsel %vm281, %v1410, 0
      %v1470 = vsel %vm281, %v1411, 0
      %v1473 = vsel %vm281, %v1412, 0
      %v1476 = vsel %vm281, %v1413, 0
      %v1479 = vsel %vm281, %v1414, 0
      %v1482 = vsel %vm281, %v1415, 0
      %v1485 = vsel %vm281, %v1416, 0
      %v1488 = vsel %vm281, %v1417, 0
      %v1491 = vsel %vm281, %v1418, 0
      %v1494 = vsel %vm281, %v1419, 0
      %v1497 = vsel %vm281, %v1420, 0
      %v1500 = vsel %vm281, %v1421, 0
      %v1503 = vsel %vm281, %v1422, 0
      %v1506 = vsel %vm281, %v1423, 0
      %v1509 = vsel %vm281, %v1424, 0
      %v1512 = vsel %vm366, %v1426, 0
      %1514 = vmatpush.msra.mxu0 0.0
      %1515 = vmatpush.msra.mxu0 0.0
      %1516 = vmatpush.msra.mxu0 0.0
      %1517 = vmatpush.msra.mxu0 0.0
      %1518 = vmatpush.msra.mxu0 0.0
      %1519 = vmatpush.msra.mxu0 0.0
      %1520 = vmatpush.msra.mxu0 0.0
      %1521 = vmatpush.msra.mxu0 0.0
      %1522 = vmatpush.msra.mxu0 0.0
      %1523 = vmatpush.msra.mxu0 0.0
      %1524 = vmatpush.msra.mxu0 0.0
      %1525 = vmatpush.msra.mxu0 0.0
      %1526 = vmatpush.msra.mxu0 0.0
      %1527 = vmatpush.msra.mxu0 0.0
      %1528 = vmatpush.msra.mxu0 0.0
      %1529 = vmatpush.msra.mxu0 %v1512
      %1530 = vmatmul.f32.gmra.mxu0 %v1428
      %v1531 = vpop.f32.mrf.mxu0
      %v1532 = vadd.f32 0.0, %v1531
      %1533 = vmatmul.f32.gmra.mxu0 %v1431
      %v1534 = vpop.f32.mrf.mxu0
      %v1535 = vadd.f32 0.0, %v1534
      %1536 = vmatmul.f32.gmra.mxu0 %v1434
      %v1537 = vpop.f32.mrf.mxu0
      %v1538 = vadd.f32 0.0, %v1537
      %1539 = vmatmul.f32.gmra.mxu0 %v1437
      %v1540 = vpop.f32.mrf.mxu0
      %v1541 = vadd.f32 0.0, %v1540
      %1542 = vmatmul.f32.gmra.mxu0 %v1440
      %v1543 = vpop.f32.mrf.mxu0
      %v1544 = vadd.f32 0.0, %v1543
      %1545 = vmatmul.f32.gmra.mxu0 %v1443
      %v1546 = vpop.f32.mrf.mxu0
      %v1547 = vadd.f32 0.0, %v1546
      %1548 = vmatmul.f32.gmra.mxu0 %v1446
      %v1549 = vpop.f32.mrf.mxu0
      %v1550 = vadd.f32 0.0, %v1549
      %1551 = vmatmul.f32.gmra.mxu0 %v1449
      %v1552 = vpop.f32.mrf.mxu0
      %v1553 = vadd.f32 0.0, %v1552
      %1554 = vmatmul.f32.gmra.mxu0 %v1452
      %v1555 = vpop.f32.mrf.mxu0
      %v1556 = vadd.f32 0.0, %v1555
      %1557 = vmatmul.f32.gmra.mxu0 %v1455
      %v1558 = vpop.f32.mrf.mxu0
      %v1559 = vadd.f32 0.0, %v1558
      %1560 = vmatmul.f32.gmra.mxu0 %v1458
      %v1561 = vpop.f32.mrf.mxu0
      %v1562 = vadd.f32 0.0, %v1561
      %1563 = vmatmul.f32.gmra.mxu0 %v1461
      %v1564 = vpop.f32.mrf.mxu0
      %v1565 = vadd.f32 0.0, %v1564
      %1566 = vmatmul.f32.gmra.mxu0 %v1464
      %v1567 = vpop.f32.mrf.mxu0
      %v1568 = vadd.f32 0.0, %v1567
      %1569 = vmatmul.f32.gmra.mxu0 %v1467
      %v1570 = vpop.f32.mrf.mxu0
      %v1571 = vadd.f32 0.0, %v1570
      %1572 = vmatmul.f32.gmra.mxu0 %v1470
      %v1573 = vpop.f32.mrf.mxu0
      %v1574 = vadd.f32 0.0, %v1573
      %1575 = vmatmul.f32.gmra.mxu0 %v1473
      %v1576 = vpop.f32.mrf.mxu0
      %v1577 = vadd.f32 0.0, %v1576
      %1578 = vmatmul.f32.gmra.mxu0 %v1476
      %v1579 = vpop.f32.mrf.mxu0
      %v1580 = vadd.f32 0.0, %v1579
      %1581 = vmatmul.f32.gmra.mxu0 %v1479
      %v1582 = vpop.f32.mrf.mxu0
      %v1583 = vadd.f32 0.0, %v1582
      %1584 = vmatmul.f32.gmra.mxu0 %v1482
      %v1585 = vpop.f32.mrf.mxu0
      %v1586 = vadd.f32 0.0, %v1585
      %1587 = vmatmul.f32.gmra.mxu0 %v1485
      %v1588 = vpop.f32.mrf.mxu0
      %v1589 = vadd.f32 0.0, %v1588
      %1590 = vmatmul.f32.gmra.mxu0 %v1488
      %v1591 = vpop.f32.mrf.mxu0
      %v1592 = vadd.f32 0.0, %v1591
      %1593 = vmatmul.f32.gmra.mxu0 %v1491
      %v1594 = vpop.f32.mrf.mxu0
      %v1595 = vadd.f32 0.0, %v1594
      %1596 = vmatmul.f32.gmra.mxu0 %v1494
      %v1597 = vpop.f32.mrf.mxu0
      %v1598 = vadd.f32 0.0, %v1597
      %1599 = vmatmul.f32.gmra.mxu0 %v1497
      %v1600 = vpop.f32.mrf.mxu0
      %v1601 = vadd.f32 0.0, %v1600
      %1602 = vmatmul.f32.gmra.mxu0 %v1500
      %v1603 = vpop.f32.mrf.mxu0
      %v1604 = vadd.f32 0.0, %v1603
      %1605 = vmatmul.f32.gmra.mxu0 %v1503
      %v1606 = vpop.f32.mrf.mxu0
      %v1607 = vadd.f32 0.0, %v1606
      %1608 = vmatmul.f32.gmra.mxu0 %v1506
      %v1609 = vpop.f32.mrf.mxu0
      %v1610 = vadd.f32 0.0, %v1609
      %1611 = vmatmul.f32.gmra.mxu0 %v1509
      %v1612 = vpop.f32.mrf.mxu0
      %v1613 = vadd.f32 0.0, %v1612
      %1614 = vdwg.mxu0
      %v1615 = vadd.f32 %v1369, %v1532
      %v1616 = vadd.f32 %v1370, %v1535
      %v1617 = vadd.f32 %v1371, %v1538
      %v1618 = vadd.f32 %v1372, %v1541
      %v1619 = vadd.f32 %v1373, %v1544
      %v1620 = vadd.f32 %v1374, %v1547
      %v1621 = vadd.f32 %v1375, %v1550
      %v1622 = vadd.f32 %v1376, %v1553
      %v1623 = vadd.f32 %v1377, %v1556
      %v1624 = vadd.f32 %v1378, %v1559
      %v1625 = vadd.f32 %v1379, %v1562
      %v1626 = vadd.f32 %v1380, %v1565
      %v1627 = vadd.f32 %v1381, %v1568
      %v1628 = vadd.f32 %v1382, %v1571
      %v1629 = vadd.f32 %v1383, %v1574
      %v1630 = vadd.f32 %v1384, %v1577
      %v1631 = vadd.f32 %v1385, %v1580
      %v1632 = vadd.f32 %v1386, %v1583
      %v1633 = vadd.f32 %v1387, %v1586
      %v1634 = vadd.f32 %v1388, %v1589
      %v1635 = vadd.f32 %v1389, %v1592
      %v1636 = vadd.f32 %v1390, %v1595
      %v1637 = vadd.f32 %v1391, %v1598
      %v1638 = vadd.f32 %v1392, %v1601
      %v1639 = vadd.f32 %v1393, %v1604
      %v1640 = vadd.f32 %v1394, %v1607
      %v1641 = vadd.f32 %v1395, %v1610
      %v1642 = vadd.f32 %v1396, %v1613
      %v1643 = vld [vmem:[%s206 + $0x20] sm:$0xff]
      %v1644 = vld [vmem:[%s206 + $0x28] sm:$0xff]
      %v1645 = vld [vmem:[%s206 + $0x30] sm:$0xff]
      %v1646 = vld [vmem:[%s206 + $0x38] sm:$0xff]
      %v1647 = vld [vmem:[%s206 + $0x40] sm:$0xff]
      %v1648 = vld [vmem:[%s206 + $0x48] sm:$0xff]
      %v1649 = vld [vmem:[%s206 + $0x50] sm:$0xff]
      %v1650 = vld [vmem:[%s206 + $0x58] sm:$0xff]
      %v1651 = vld [vmem:[%s206 + $0x60] sm:$0xff]
      %v1652 = vld [vmem:[%s206 + $0x68] sm:$0xff]
      %v1653 = vld [vmem:[%s206 + $0x70] sm:$0xff]
      %v1654 = vld [vmem:[%s206 + $0x78] sm:$0xff]
      %v1655 = vld [vmem:[%s206 + $0x80] sm:$0xff]
      %v1656 = vld [vmem:[%s206 + $0x88] sm:$0xff]
      %v1657 = vld [vmem:[%s206 + $0x90] sm:$0xff]
      %v1658 = vld [vmem:[%s206 + $0x98] sm:$0xff]
      %v1659 = vld [vmem:[%s206 + $0xa0] sm:$0xff]
      %v1660 = vld [vmem:[%s206 + $0xa8] sm:$0xff]
      %v1661 = vld [vmem:[%s206 + $0xb0] sm:$0xff]
      %v1662 = vld [vmem:[%s206 + $0xb8] sm:$0xff]
      %v1663 = vld [vmem:[%s206 + $0xc0] sm:$0xff]
      %v1664 = vld [vmem:[%s206 + $0xc8] sm:$0xff]
      %v1665 = vld [vmem:[%s206 + $0xd0] sm:$0xff]
      %v1666 = vld [vmem:[%s206 + $0xd8] sm:$0xff]
      %v1667 = vld [vmem:[%s206 + $0xe0] sm:$0xff]
      %v1668 = vld [vmem:[%s206 + $0xe8] sm:$0xff]
      %v1669 = vld [vmem:[%s206 + $0xf0] sm:$0xff]
      %v1670 = vld [vmem:[%s206 + $0xf8] sm:$0xff]
      %s1671 = scalar_lea.vmem %s210, 24
      %v1672 = vld [vmem:[%s1671] sm:$0xf]
      %v1674 = vsel %vm281, %v1643, 0
      %v1677 = vsel %vm281, %v1644, 0
      %v1680 = vsel %vm281, %v1645, 0
      %v1683 = vsel %vm281, %v1646, 0
      %v1686 = vsel %vm281, %v1647, 0
      %v1689 = vsel %vm281, %v1648, 0
      %v1692 = vsel %vm281, %v1649, 0
      %v1695 = vsel %vm281, %v1650, 0
      %v1698 = vsel %vm281, %v1651, 0
      %v1701 = vsel %vm281, %v1652, 0
      %v1704 = vsel %vm281, %v1653, 0
      %v1707 = vsel %vm281, %v1654, 0
      %v1710 = vsel %vm281, %v1655, 0
      %v1713 = vsel %vm281, %v1656, 0
      %v1716 = vsel %vm281, %v1657, 0
      %v1719 = vsel %vm281, %v1658, 0
      %v1722 = vsel %vm281, %v1659, 0
      %v1725 = vsel %vm281, %v1660, 0
      %v1728 = vsel %vm281, %v1661, 0
      %v1731 = vsel %vm281, %v1662, 0
      %v1734 = vsel %vm281, %v1663, 0
      %v1737 = vsel %vm281, %v1664, 0
      %v1740 = vsel %vm281, %v1665, 0
      %v1743 = vsel %vm281, %v1666, 0
      %v1746 = vsel %vm281, %v1667, 0
      %v1749 = vsel %vm281, %v1668, 0
      %v1752 = vsel %vm281, %v1669, 0
      %v1755 = vsel %vm281, %v1670, 0
      %v1758 = vsel %vm366, %v1672, 0
      %1760 = vmatpush.msra.mxu0 0.0
      %1761 = vmatpush.msra.mxu0 0.0
      %1762 = vmatpush.msra.mxu0 0.0
      %1763 = vmatpush.msra.mxu0 0.0
      %1764 = vmatpush.msra.mxu0 0.0
      %1765 = vmatpush.msra.mxu0 0.0
      %1766 = vmatpush.msra.mxu0 0.0
      %1767 = vmatpush.msra.mxu0 0.0
      %1768 = vmatpush.msra.mxu0 0.0
      %1769 = vmatpush.msra.mxu0 0.0
      %1770 = vmatpush.msra.mxu0 0.0
      %1771 = vmatpush.msra.mxu0 0.0
      %1772 = vmatpush.msra.mxu0 0.0
      %1773 = vmatpush.msra.mxu0 0.0
      %1774 = vmatpush.msra.mxu0 0.0
      %1775 = vmatpush.msra.mxu0 %v1758
      %1776 = vmatmul.f32.gmra.mxu0 %v1674
      %v1777 = vpop.f32.mrf.mxu0
      %v1778 = vadd.f32 0.0, %v1777
      %1779 = vmatmul.f32.gmra.mxu0 %v1677
      %v1780 = vpop.f32.mrf.mxu0
      %v1781 = vadd.f32 0.0, %v1780
      %1782 = vmatmul.f32.gmra.mxu0 %v1680
      %v1783 = vpop.f32.mrf.mxu0
      %v1784 = vadd.f32 0.0, %v1783
      %1785 = vmatmul.f32.gmra.mxu0 %v1683
      %v1786 = vpop.f32.mrf.mxu0
      %v1787 = vadd.f32 0.0, %v1786
      %1788 = vmatmul.f32.gmra.mxu0 %v1686
      %v1789 = vpop.f32.mrf.mxu0
      %v1790 = vadd.f32 0.0, %v1789
      %1791 = vmatmul.f32.gmra.mxu0 %v1689
      %v1792 = vpop.f32.mrf.mxu0
      %v1793 = vadd.f32 0.0, %v1792
      %1794 = vmatmul.f32.gmra.mxu0 %v1692
      %v1795 = vpop.f32.mrf.mxu0
      %v1796 = vadd.f32 0.0, %v1795
      %1797 = vmatmul.f32.gmra.mxu0 %v1695
      %v1798 = vpop.f32.mrf.mxu0
      %v1799 = vadd.f32 0.0, %v1798
      %1800 = vmatmul.f32.gmra.mxu0 %v1698
      %v1801 = vpop.f32.mrf.mxu0
      %v1802 = vadd.f32 0.0, %v1801
      %1803 = vmatmul.f32.gmra.mxu0 %v1701
      %v1804 = vpop.f32.mrf.mxu0
      %v1805 = vadd.f32 0.0, %v1804
      %1806 = vmatmul.f32.gmra.mxu0 %v1704
      %v1807 = vpop.f32.mrf.mxu0
      %v1808 = vadd.f32 0.0, %v1807
      %1809 = vmatmul.f32.gmra.mxu0 %v1707
      %v1810 = vpop.f32.mrf.mxu0
      %v1811 = vadd.f32 0.0, %v1810
      %1812 = vmatmul.f32.gmra.mxu0 %v1710
      %v1813 = vpop.f32.mrf.mxu0
      %v1814 = vadd.f32 0.0, %v1813
      %1815 = vmatmul.f32.gmra.mxu0 %v1713
      %v1816 = vpop.f32.mrf.mxu0
      %v1817 = vadd.f32 0.0, %v1816
      %1818 = vmatmul.f32.gmra.mxu0 %v1716
      %v1819 = vpop.f32.mrf.mxu0
      %v1820 = vadd.f32 0.0, %v1819
      %1821 = vmatmul.f32.gmra.mxu0 %v1719
      %v1822 = vpop.f32.mrf.mxu0
      %v1823 = vadd.f32 0.0, %v1822
      %1824 = vmatmul.f32.gmra.mxu0 %v1722
      %v1825 = vpop.f32.mrf.mxu0
      %v1826 = vadd.f32 0.0, %v1825
      %1827 = vmatmul.f32.gmra.mxu0 %v1725
      %v1828 = vpop.f32.mrf.mxu0
      %v1829 = vadd.f32 0.0, %v1828
      %1830 = vmatmul.f32.gmra.mxu0 %v1728
      %v1831 = vpop.f32.mrf.mxu0
      %v1832 = vadd.f32 0.0, %v1831
      %1833 = vmatmul.f32.gmra.mxu0 %v1731
      %v1834 = vpop.f32.mrf.mxu0
      %v1835 = vadd.f32 0.0, %v1834
      %1836 = vmatmul.f32.gmra.mxu0 %v1734
      %v1837 = vpop.f32.mrf.mxu0
      %v1838 = vadd.f32 0.0, %v1837
      %1839 = vmatmul.f32.gmra.mxu0 %v1737
      %v1840 = vpop.f32.mrf.mxu0
      %v1841 = vadd.f32 0.0, %v1840
      %1842 = vmatmul.f32.gmra.mxu0 %v1740
      %v1843 = vpop.f32.mrf.mxu0
      %v1844 = vadd.f32 0.0, %v1843
      %1845 = vmatmul.f32.gmra.mxu0 %v1743
      %v1846 = vpop.f32.mrf.mxu0
      %v1847 = vadd.f32 0.0, %v1846
      %1848 = vmatmul.f32.gmra.mxu0 %v1746
      %v1849 = vpop.f32.mrf.mxu0
      %v1850 = vadd.f32 0.0, %v1849
      %1851 = vmatmul.f32.gmra.mxu0 %v1749
      %v1852 = vpop.f32.mrf.mxu0
      %v1853 = vadd.f32 0.0, %v1852
      %1854 = vmatmul.f32.gmra.mxu0 %v1752
      %v1855 = vpop.f32.mrf.mxu0
      %v1856 = vadd.f32 0.0, %v1855
      %1857 = vmatmul.f32.gmra.mxu0 %v1755
      %v1858 = vpop.f32.mrf.mxu0
      %v1859 = vadd.f32 0.0, %v1858
      %1860 = vdwg.mxu0
      %v1861 = vadd.f32 %v1615, %v1778
      %v1862 = vadd.f32 %v1616, %v1781
      %v1863 = vadd.f32 %v1617, %v1784
      %v1864 = vadd.f32 %v1618, %v1787
      %v1865 = vadd.f32 %v1619, %v1790
      %v1866 = vadd.f32 %v1620, %v1793
      %v1867 = vadd.f32 %v1621, %v1796
      %v1868 = vadd.f32 %v1622, %v1799
      %v1869 = vadd.f32 %v1623, %v1802
      %v1870 = vadd.f32 %v1624, %v1805
      %v1871 = vadd.f32 %v1625, %v1808
      %v1872 = vadd.f32 %v1626, %v1811
      %v1873 = vadd.f32 %v1627, %v1814
      %v1874 = vadd.f32 %v1628, %v1817
      %v1875 = vadd.f32 %v1629, %v1820
      %v1876 = vadd.f32 %v1630, %v1823
      %v1877 = vadd.f32 %v1631, %v1826
      %v1878 = vadd.f32 %v1632, %v1829
      %v1879 = vadd.f32 %v1633, %v1832
      %v1880 = vadd.f32 %v1634, %v1835
      %v1881 = vadd.f32 %v1635, %v1838
      %v1882 = vadd.f32 %v1636, %v1841
      %v1883 = vadd.f32 %v1637, %v1844
      %v1884 = vadd.f32 %v1638, %v1847
      %v1885 = vadd.f32 %v1639, %v1850
      %v1886 = vadd.f32 %v1640, %v1853
      %v1887 = vadd.f32 %v1641, %v1856
      %v1888 = vadd.f32 %v1642, %v1859
      %v1889 = vld [vmem:[%s206 + $0x21] sm:$0xff]
      %v1890 = vld [vmem:[%s206 + $0x29] sm:$0xff]
      %v1891 = vld [vmem:[%s206 + $0x31] sm:$0xff]
      %v1892 = vld [vmem:[%s206 + $0x39] sm:$0xff]
      %v1893 = vld [vmem:[%s206 + $0x41] sm:$0xff]
      %v1894 = vld [vmem:[%s206 + $0x49] sm:$0xff]
      %v1895 = vld [vmem:[%s206 + $0x51] sm:$0xff]
      %v1896 = vld [vmem:[%s206 + $0x59] sm:$0xff]
      %v1897 = vld [vmem:[%s206 + $0x61] sm:$0xff]
      %v1898 = vld [vmem:[%s206 + $0x69] sm:$0xff]
      %v1899 = vld [vmem:[%s206 + $0x71] sm:$0xff]
      %v1900 = vld [vmem:[%s206 + $0x79] sm:$0xff]
      %v1901 = vld [vmem:[%s206 + $0x81] sm:$0xff]
      %v1902 = vld [vmem:[%s206 + $0x89] sm:$0xff]
      %v1903 = vld [vmem:[%s206 + $0x91] sm:$0xff]
      %v1904 = vld [vmem:[%s206 + $0x99] sm:$0xff]
      %v1905 = vld [vmem:[%s206 + $0xa1] sm:$0xff]
      %v1906 = vld [vmem:[%s206 + $0xa9] sm:$0xff]
      %v1907 = vld [vmem:[%s206 + $0xb1] sm:$0xff]
      %v1908 = vld [vmem:[%s206 + $0xb9] sm:$0xff]
      %v1909 = vld [vmem:[%s206 + $0xc1] sm:$0xff]
      %v1910 = vld [vmem:[%s206 + $0xc9] sm:$0xff]
      %v1911 = vld [vmem:[%s206 + $0xd1] sm:$0xff]
      %v1912 = vld [vmem:[%s206 + $0xd9] sm:$0xff]
      %v1913 = vld [vmem:[%s206 + $0xe1] sm:$0xff]
      %v1914 = vld [vmem:[%s206 + $0xe9] sm:$0xff]
      %v1915 = vld [vmem:[%s206 + $0xf1] sm:$0xff]
      %v1916 = vld [vmem:[%s206 + $0xf9] sm:$0xff]
      %s1917 = scalar_lea.vmem %s210, 28
      %v1918 = vld [vmem:[%s1917] sm:$0xf]
      %v1920 = vsel %vm281, %v1889, 0
      %v1923 = vsel %vm281, %v1890, 0
      %v1926 = vsel %vm281, %v1891, 0
      %v1929 = vsel %vm281, %v1892, 0
      %v1932 = vsel %vm281, %v1893, 0
      %v1935 = vsel %vm281, %v1894, 0
      %v1938 = vsel %vm281, %v1895, 0
      %v1941 = vsel %vm281, %v1896, 0
      %v1944 = vsel %vm281, %v1897, 0
      %v1947 = vsel %vm281, %v1898, 0
      %v1950 = vsel %vm281, %v1899, 0
      %v1953 = vsel %vm281, %v1900, 0
      %v1956 = vsel %vm281, %v1901, 0
      %v1959 = vsel %vm281, %v1902, 0
      %v1962 = vsel %vm281, %v1903, 0
      %v1965 = vsel %vm281, %v1904, 0
      %v1968 = vsel %vm281, %v1905, 0
      %v1971 = vsel %vm281, %v1906, 0
      %v1974 = vsel %vm281, %v1907, 0
      %v1977 = vsel %vm281, %v1908, 0
      %v1980 = vsel %vm281, %v1909, 0
      %v1983 = vsel %vm281, %v1910, 0
      %v1986 = vsel %vm281, %v1911, 0
      %v1989 = vsel %vm281, %v1912, 0
      %v1992 = vsel %vm281, %v1913, 0
      %v1995 = vsel %vm281, %v1914, 0
      %v1998 = vsel %vm281, %v1915, 0
      %v2001 = vsel %vm281, %v1916, 0
      %v2004 = vsel %vm366, %v1918, 0
      %2006 = vmatpush.msra.mxu0 0.0
      %2007 = vmatpush.msra.mxu0 0.0
      %2008 = vmatpush.msra.mxu0 0.0
      %2009 = vmatpush.msra.mxu0 0.0
      %2010 = vmatpush.msra.mxu0 0.0
      %2011 = vmatpush.msra.mxu0 0.0
      %2012 = vmatpush.msra.mxu0 0.0
      %2013 = vmatpush.msra.mxu0 0.0
      %2014 = vmatpush.msra.mxu0 0.0
      %2015 = vmatpush.msra.mxu0 0.0
      %2016 = vmatpush.msra.mxu0 0.0
      %2017 = vmatpush.msra.mxu0 0.0
      %2018 = vmatpush.msra.mxu0 0.0
      %2019 = vmatpush.msra.mxu0 0.0
      %2020 = vmatpush.msra.mxu0 0.0
      %2021 = vmatpush.msra.mxu0 %v2004
      %2022 = vmatmul.f32.gmra.mxu0 %v1920
      %v2023 = vpop.f32.mrf.mxu0
      %v2024 = vadd.f32 0.0, %v2023
      %2025 = vmatmul.f32.gmra.mxu0 %v1923
      %v2026 = vpop.f32.mrf.mxu0
      %v2027 = vadd.f32 0.0, %v2026
      %2028 = vmatmul.f32.gmra.mxu0 %v1926
      %v2029 = vpop.f32.mrf.mxu0
      %v2030 = vadd.f32 0.0, %v2029
      %2031 = vmatmul.f32.gmra.mxu0 %v1929
      %v2032 = vpop.f32.mrf.mxu0
      %v2033 = vadd.f32 0.0, %v2032
      %2034 = vmatmul.f32.gmra.mxu0 %v1932
      %v2035 = vpop.f32.mrf.mxu0
      %v2036 = vadd.f32 0.0, %v2035
      %2037 = vmatmul.f32.gmra.mxu0 %v1935
      %v2038 = vpop.f32.mrf.mxu0
      %v2039 = vadd.f32 0.0, %v2038
      %2040 = vmatmul.f32.gmra.mxu0 %v1938
      %v2041 = vpop.f32.mrf.mxu0
      %v2042 = vadd.f32 0.0, %v2041
      %2043 = vmatmul.f32.gmra.mxu0 %v1941
      %v2044 = vpop.f32.mrf.mxu0
      %v2045 = vadd.f32 0.0, %v2044
      %2046 = vmatmul.f32.gmra.mxu0 %v1944
      %v2047 = vpop.f32.mrf.mxu0
      %v2048 = vadd.f32 0.0, %v2047
      %2049 = vmatmul.f32.gmra.mxu0 %v1947
      %v2050 = vpop.f32.mrf.mxu0
      %v2051 = vadd.f32 0.0, %v2050
      %2052 = vmatmul.f32.gmra.mxu0 %v1950
      %v2053 = vpop.f32.mrf.mxu0
      %v2054 = vadd.f32 0.0, %v2053
      %2055 = vmatmul.f32.gmra.mxu0 %v1953
      %v2056 = vpop.f32.mrf.mxu0
      %v2057 = vadd.f32 0.0, %v2056
      %2058 = vmatmul.f32.gmra.mxu0 %v1956
      %v2059 = vpop.f32.mrf.mxu0
      %v2060 = vadd.f32 0.0, %v2059
      %2061 = vmatmul.f32.gmra.mxu0 %v1959
      %v2062 = vpop.f32.mrf.mxu0
      %v2063 = vadd.f32 0.0, %v2062
      %2064 = vmatmul.f32.gmra.mxu0 %v1962
      %v2065 = vpop.f32.mrf.mxu0
      %v2066 = vadd.f32 0.0, %v2065
      %2067 = vmatmul.f32.gmra.mxu0 %v1965
      %v2068 = vpop.f32.mrf.mxu0
      %v2069 = vadd.f32 0.0, %v2068
      %2070 = vmatmul.f32.gmra.mxu0 %v1968
      %v2071 = vpop.f32.mrf.mxu0
      %v2072 = vadd.f32 0.0, %v2071
      %2073 = vmatmul.f32.gmra.mxu0 %v1971
      %v2074 = vpop.f32.mrf.mxu0
      %v2075 = vadd.f32 0.0, %v2074
      %2076 = vmatmul.f32.gmra.mxu0 %v1974
      %v2077 = vpop.f32.mrf.mxu0
      %v2078 = vadd.f32 0.0, %v2077
      %2079 = vmatmul.f32.gmra.mxu0 %v1977
      %v2080 = vpop.f32.mrf.mxu0
      %v2081 = vadd.f32 0.0, %v2080
      %2082 = vmatmul.f32.gmra.mxu0 %v1980
      %v2083 = vpop.f32.mrf.mxu0
      %v2084 = vadd.f32 0.0, %v2083
      %2085 = vmatmul.f32.gmra.mxu0 %v1983
      %v2086 = vpop.f32.mrf.mxu0
      %v2087 = vadd.f32 0.0, %v2086
      %2088 = vmatmul.f32.gmra.mxu0 %v1986
      %v2089 = vpop.f32.mrf.mxu0
      %v2090 = vadd.f32 0.0, %v2089
      %2091 = vmatmul.f32.gmra.mxu0 %v1989
      %v2092 = vpop.f32.mrf.mxu0
      %v2093 = vadd.f32 0.0, %v2092
      %2094 = vmatmul.f32.gmra.mxu0 %v1992
      %v2095 = vpop.f32.mrf.mxu0
      %v2096 = vadd.f32 0.0, %v2095
      %2097 = vmatmul.f32.gmra.mxu0 %v1995
      %v2098 = vpop.f32.mrf.mxu0
      %v2099 = vadd.f32 0.0, %v2098
      %2100 = vmatmul.f32.gmra.mxu0 %v1998
      %v2101 = vpop.f32.mrf.mxu0
      %v2102 = vadd.f32 0.0, %v2101
      %2103 = vmatmul.f32.gmra.mxu0 %v2001
      %v2104 = vpop.f32.mrf.mxu0
      %v2105 = vadd.f32 0.0, %v2104
      %2106 = vdwg.mxu0
      %v2107 = vadd.f32 %v1861, %v2024
      %v2108 = vadd.f32 %v1862, %v2027
      %v2109 = vadd.f32 %v1863, %v2030
      %v2110 = vadd.f32 %v1864, %v2033
      %v2111 = vadd.f32 %v1865, %v2036
      %v2112 = vadd.f32 %v1866, %v2039
      %v2113 = vadd.f32 %v1867, %v2042
      %v2114 = vadd.f32 %v1868, %v2045
      %v2115 = vadd.f32 %v1869, %v2048
      %v2116 = vadd.f32 %v1870, %v2051
      %v2117 = vadd.f32 %v1871, %v2054
      %v2118 = vadd.f32 %v1872, %v2057
      %v2119 = vadd.f32 %v1873, %v2060
      %v2120 = vadd.f32 %v1874, %v2063
      %v2121 = vadd.f32 %v1875, %v2066
      %v2122 = vadd.f32 %v1876, %v2069
      %v2123 = vadd.f32 %v1877, %v2072
      %v2124 = vadd.f32 %v1878, %v2075
      %v2125 = vadd.f32 %v1879, %v2078
      %v2126 = vadd.f32 %v1880, %v2081
      %v2127 = vadd.f32 %v1881, %v2084
      %v2128 = vadd.f32 %v1882, %v2087
      %v2129 = vadd.f32 %v1883, %v2090
      %v2130 = vadd.f32 %v1884, %v2093
      %v2131 = vadd.f32 %v1885, %v2096
      %v2132 = vadd.f32 %v1886, %v2099
      %v2133 = vadd.f32 %v1887, %v2102
      %v2134 = vadd.f32 %v1888, %v2105
      %v2135 = vld [vmem:[%s206 + $0x22] sm:$0xff]
      %v2136 = vld [vmem:[%s206 + $0x2a] sm:$0xff]
      %v2137 = vld [vmem:[%s206 + $0x32] sm:$0xff]
      %v2138 = vld [vmem:[%s206 + $0x3a] sm:$0xff]
      %v2139 = vld [vmem:[%s206 + $0x42] sm:$0xff]
      %v2140 = vld [vmem:[%s206 + $0x4a] sm:$0xff]
      %v2141 = vld [vmem:[%s206 + $0x52] sm:$0xff]
      %v2142 = vld [vmem:[%s206 + $0x5a] sm:$0xff]
      %v2143 = vld [vmem:[%s206 + $0x62] sm:$0xff]
      %v2144 = vld [vmem:[%s206 + $0x6a] sm:$0xff]
      %v2145 = vld [vmem:[%s206 + $0x72] sm:$0xff]
      %v2146 = vld [vmem:[%s206 + $0x7a] sm:$0xff]
      %v2147 = vld [vmem:[%s206 + $0x82] sm:$0xff]
      %v2148 = vld [vmem:[%s206 + $0x8a] sm:$0xff]
      %v2149 = vld [vmem:[%s206 + $0x92] sm:$0xff]
      %v2150 = vld [vmem:[%s206 + $0x9a] sm:$0xff]
      %v2151 = vld [vmem:[%s206 + $0xa2] sm:$0xff]
      %v2152 = vld [vmem:[%s206 + $0xaa] sm:$0xff]
      %v2153 = vld [vmem:[%s206 + $0xb2] sm:$0xff]
      %v2154 = vld [vmem:[%s206 + $0xba] sm:$0xff]
      %v2155 = vld [vmem:[%s206 + $0xc2] sm:$0xff]
      %v2156 = vld [vmem:[%s206 + $0xca] sm:$0xff]
      %v2157 = vld [vmem:[%s206 + $0xd2] sm:$0xff]
      %v2158 = vld [vmem:[%s206 + $0xda] sm:$0xff]
      %v2159 = vld [vmem:[%s206 + $0xe2] sm:$0xff]
      %v2160 = vld [vmem:[%s206 + $0xea] sm:$0xff]
      %v2161 = vld [vmem:[%s206 + $0xf2] sm:$0xff]
      %v2162 = vld [vmem:[%s206 + $0xfa] sm:$0xff]
      %s2163 = scalar_lea.vmem %s210, 32
      %v2164 = vld [vmem:[%s2163] sm:$0xf]
      %v2166 = vsel %vm281, %v2135, 0
      %v2169 = vsel %vm281, %v2136, 0
      %v2172 = vsel %vm281, %v2137, 0
      %v2175 = vsel %vm281, %v2138, 0
      %v2178 = vsel %vm281, %v2139, 0
      %v2181 = vsel %vm281, %v2140, 0
      %v2184 = vsel %vm281, %v2141, 0
      %v2187 = vsel %vm281, %v2142, 0
      %v2190 = vsel %vm281, %v2143, 0
      %v2193 = vsel %vm281, %v2144, 0
      %v2196 = vsel %vm281, %v2145, 0
      %v2199 = vsel %vm281, %v2146, 0
      %v2202 = vsel %vm281, %v2147, 0
      %v2205 = vsel %vm281, %v2148, 0
      %v2208 = vsel %vm281, %v2149, 0
      %v2211 = vsel %vm281, %v2150, 0
      %v2214 = vsel %vm281, %v2151, 0
      %v2217 = vsel %vm281, %v2152, 0
      %v2220 = vsel %vm281, %v2153, 0
      %v2223 = vsel %vm281, %v2154, 0
      %v2226 = vsel %vm281, %v2155, 0
      %v2229 = vsel %vm281, %v2156, 0
      %v2232 = vsel %vm281, %v2157, 0
      %v2235 = vsel %vm281, %v2158, 0
      %v2238 = vsel %vm281, %v2159, 0
      %v2241 = vsel %vm281, %v2160, 0
      %v2244 = vsel %vm281, %v2161, 0
      %v2247 = vsel %vm281, %v2162, 0
      %v2250 = vsel %vm366, %v2164, 0
      %2252 = vmatpush.msra.mxu0 0.0
      %2253 = vmatpush.msra.mxu0 0.0
      %2254 = vmatpush.msra.mxu0 0.0
      %2255 = vmatpush.msra.mxu0 0.0
      %2256 = vmatpush.msra.mxu0 0.0
      %2257 = vmatpush.msra.mxu0 0.0
      %2258 = vmatpush.msra.mxu0 0.0
      %2259 = vmatpush.msra.mxu0 0.0
      %2260 = vmatpush.msra.mxu0 0.0
      %2261 = vmatpush.msra.mxu0 0.0
      %2262 = vmatpush.msra.mxu0 0.0
      %2263 = vmatpush.msra.mxu0 0.0
      %2264 = vmatpush.msra.mxu0 0.0
      %2265 = vmatpush.msra.mxu0 0.0
      %2266 = vmatpush.msra.mxu0 0.0
      %2267 = vmatpush.msra.mxu0 %v2250
      %2268 = vmatmul.f32.gmra.mxu0 %v2166
      %v2269 = vpop.f32.mrf.mxu0
      %v2270 = vadd.f32 0.0, %v2269
      %2271 = vmatmul.f32.gmra.mxu0 %v2169
      %v2272 = vpop.f32.mrf.mxu0
      %v2273 = vadd.f32 0.0, %v2272
      %2274 = vmatmul.f32.gmra.mxu0 %v2172
      %v2275 = vpop.f32.mrf.mxu0
      %v2276 = vadd.f32 0.0, %v2275
      %2277 = vmatmul.f32.gmra.mxu0 %v2175
      %v2278 = vpop.f32.mrf.mxu0
      %v2279 = vadd.f32 0.0, %v2278
      %2280 = vmatmul.f32.gmra.mxu0 %v2178
      %v2281 = vpop.f32.mrf.mxu0
      %v2282 = vadd.f32 0.0, %v2281
      %2283 = vmatmul.f32.gmra.mxu0 %v2181
      %v2284 = vpop.f32.mrf.mxu0
      %v2285 = vadd.f32 0.0, %v2284
      %2286 = vmatmul.f32.gmra.mxu0 %v2184
      %v2287 = vpop.f32.mrf.mxu0
      %v2288 = vadd.f32 0.0, %v2287
      %2289 = vmatmul.f32.gmra.mxu0 %v2187
      %v2290 = vpop.f32.mrf.mxu0
      %v2291 = vadd.f32 0.0, %v2290
      %2292 = vmatmul.f32.gmra.mxu0 %v2190
      %v2293 = vpop.f32.mrf.mxu0
      %v2294 = vadd.f32 0.0, %v2293
      %2295 = vmatmul.f32.gmra.mxu0 %v2193
      %v2296 = vpop.f32.mrf.mxu0
      %v2297 = vadd.f32 0.0, %v2296
      %2298 = vmatmul.f32.gmra.mxu0 %v2196
      %v2299 = vpop.f32.mrf.mxu0
      %v2300 = vadd.f32 0.0, %v2299
      %2301 = vmatmul.f32.gmra.mxu0 %v2199
      %v2302 = vpop.f32.mrf.mxu0
      %v2303 = vadd.f32 0.0, %v2302
      %2304 = vmatmul.f32.gmra.mxu0 %v2202
      %v2305 = vpop.f32.mrf.mxu0
      %v2306 = vadd.f32 0.0, %v2305
      %2307 = vmatmul.f32.gmra.mxu0 %v2205
      %v2308 = vpop.f32.mrf.mxu0
      %v2309 = vadd.f32 0.0, %v2308
      %2310 = vmatmul.f32.gmra.mxu0 %v2208
      %v2311 = vpop.f32.mrf.mxu0
      %v2312 = vadd.f32 0.0, %v2311
      %2313 = vmatmul.f32.gmra.mxu0 %v2211
      %v2314 = vpop.f32.mrf.mxu0
      %v2315 = vadd.f32 0.0, %v2314
      %2316 = vmatmul.f32.gmra.mxu0 %v2214
      %v2317 = vpop.f32.mrf.mxu0
      %v2318 = vadd.f32 0.0, %v2317
      %2319 = vmatmul.f32.gmra.mxu0 %v2217
      %v2320 = vpop.f32.mrf.mxu0
      %v2321 = vadd.f32 0.0, %v2320
      %2322 = vmatmul.f32.gmra.mxu0 %v2220
      %v2323 = vpop.f32.mrf.mxu0
      %v2324 = vadd.f32 0.0, %v2323
      %2325 = vmatmul.f32.gmra.mxu0 %v2223
      %v2326 = vpop.f32.mrf.mxu0
      %v2327 = vadd.f32 0.0, %v2326
      %2328 = vmatmul.f32.gmra.mxu0 %v2226
      %v2329 = vpop.f32.mrf.mxu0
      %v2330 = vadd.f32 0.0, %v2329
      %2331 = vmatmul.f32.gmra.mxu0 %v2229
      %v2332 = vpop.f32.mrf.mxu0
      %v2333 = vadd.f32 0.0, %v2332
      %2334 = vmatmul.f32.gmra.mxu0 %v2232
      %v2335 = vpop.f32.mrf.mxu0
      %v2336 = vadd.f32 0.0, %v2335
      %2337 = vmatmul.f32.gmra.mxu0 %v2235
      %v2338 = vpop.f32.mrf.mxu0
      %v2339 = vadd.f32 0.0, %v2338
      %2340 = vmatmul.f32.gmra.mxu0 %v2238
      %v2341 = vpop.f32.mrf.mxu0
      %v2342 = vadd.f32 0.0, %v2341
      %2343 = vmatmul.f32.gmra.mxu0 %v2241
      %v2344 = vpop.f32.mrf.mxu0
      %v2345 = vadd.f32 0.0, %v2344
      %2346 = vmatmul.f32.gmra.mxu0 %v2244
      %v2347 = vpop.f32.mrf.mxu0
      %v2348 = vadd.f32 0.0, %v2347
      %2349 = vmatmul.f32.gmra.mxu0 %v2247
      %v2350 = vpop.f32.mrf.mxu0
      %v2351 = vadd.f32 0.0, %v2350
      %2352 = vdwg.mxu0
      %v2353 = vadd.f32 %v2107, %v2270
      %v2354 = vadd.f32 %v2108, %v2273
      %v2355 = vadd.f32 %v2109, %v2276
      %v2356 = vadd.f32 %v2110, %v2279
      %v2357 = vadd.f32 %v2111, %v2282
      %v2358 = vadd.f32 %v2112, %v2285
      %v2359 = vadd.f32 %v2113, %v2288
      %v2360 = vadd.f32 %v2114, %v2291
      %v2361 = vadd.f32 %v2115, %v2294
      %v2362 = vadd.f32 %v2116, %v2297
      %v2363 = vadd.f32 %v2117, %v2300
      %v2364 = vadd.f32 %v2118, %v2303
      %v2365 = vadd.f32 %v2119, %v2306
      %v2366 = vadd.f32 %v2120, %v2309
      %v2367 = vadd.f32 %v2121, %v2312
      %v2368 = vadd.f32 %v2122, %v2315
      %v2369 = vadd.f32 %v2123, %v2318
      %v2370 = vadd.f32 %v2124, %v2321
      %v2371 = vadd.f32 %v2125, %v2324
      %v2372 = vadd.f32 %v2126, %v2327
      %v2373 = vadd.f32 %v2127, %v2330
      %v2374 = vadd.f32 %v2128, %v2333
      %v2375 = vadd.f32 %v2129, %v2336
      %v2376 = vadd.f32 %v2130, %v2339
      %v2377 = vadd.f32 %v2131, %v2342
      %v2378 = vadd.f32 %v2132, %v2345
      %v2379 = vadd.f32 %v2133, %v2348
      %v2380 = vadd.f32 %v2134, %v2351
      %v2381 = vld [vmem:[%s213] sm:$0x1]
      %v2383 = vperm.slane %v2381, 0
      %v2385 = vadd.f32 %v2353, %v2383
      %v2386 = vadd.f32 %v2354, %v2383
      %v2387 = vadd.f32 %v2355, %v2383
      %v2388 = vadd.f32 %v2356, %v2383
      %v2389 = vadd.f32 %v2357, %v2383
      %v2390 = vadd.f32 %v2358, %v2383
      %v2391 = vadd.f32 %v2359, %v2383
      %v2392 = vadd.f32 %v2360, %v2383
      %v2393 = vadd.f32 %v2361, %v2383
      %v2394 = vadd.f32 %v2362, %v2383
      %v2395 = vadd.f32 %v2363, %v2383
      %v2396 = vadd.f32 %v2364, %v2383
      %v2397 = vadd.f32 %v2365, %v2383
      %v2398 = vadd.f32 %v2366, %v2383
      %v2399 = vadd.f32 %v2367, %v2383
      %v2400 = vadd.f32 %v2368, %v2383
      %v2401 = vadd.f32 %v2369, %v2383
      %v2402 = vadd.f32 %v2370, %v2383
      %v2403 = vadd.f32 %v2371, %v2383
      %v2404 = vadd.f32 %v2372, %v2383
      %v2405 = vadd.f32 %v2373, %v2383
      %v2406 = vadd.f32 %v2374, %v2383
      %v2407 = vadd.f32 %v2375, %v2383
      %v2408 = vadd.f32 %v2376, %v2383
      %v2409 = vadd.f32 %v2377, %v2383
      %v2410 = vadd.f32 %v2378, %v2383
      %v2411 = vadd.f32 %v2379, %v2383
      %v2412 = vadd.f32 %v2380, %v2383
      %2413 = vst [vmem:[%s221] sm:$0xff] %v2385
      %2414 = vst [vmem:[%s221 + $0x8] sm:$0xff] %v2386
      %2415 = vst [vmem:[%s221 + $0x10] sm:$0xff] %v2387
      %2416 = vst [vmem:[%s221 + $0x18] sm:$0xff] %v2388
      %2417 = vst [vmem:[%s221 + $0x20] sm:$0xff] %v2389
      %2418 = vst [vmem:[%s221 + $0x28] sm:$0xff] %v2390
      %2419 = vst [vmem:[%s221 + $0x30] sm:$0xff] %v2391
      %2420 = vst [vmem:[%s221 + $0x38] sm:$0xff] %v2392
      %2421 = vst [vmem:[%s221 + $0x40] sm:$0xff] %v2393
      %2422 = vst [vmem:[%s221 + $0x48] sm:$0xff] %v2394
      %2423 = vst [vmem:[%s221 + $0x50] sm:$0xff] %v2395
      %2424 = vst [vmem:[%s221 + $0x58] sm:$0xff] %v2396
      %2425 = vst [vmem:[%s221 + $0x60] sm:$0xff] %v2397
      %2426 = vst [vmem:[%s221 + $0x68] sm:$0xff] %v2398
      %2427 = vst [vmem:[%s221 + $0x70] sm:$0xff] %v2399
      %2428 = vst [vmem:[%s221 + $0x78] sm:$0xff] %v2400
      %2429 = vst [vmem:[%s221 + $0x80] sm:$0xff] %v2401
      %2430 = vst [vmem:[%s221 + $0x88] sm:$0xff] %v2402
      %2431 = vst [vmem:[%s221 + $0x90] sm:$0xff] %v2403
      %2432 = vst [vmem:[%s221 + $0x98] sm:$0xff] %v2404
      %2433 = vst [vmem:[%s221 + $0xa0] sm:$0xff] %v2405
      %2434 = vst [vmem:[%s221 + $0xa8] sm:$0xff] %v2406
      %2435 = vst [vmem:[%s221 + $0xb0] sm:$0xff] %v2407
      %2436 = vst [vmem:[%s221 + $0xb8] sm:$0xff] %v2408
      %2437 = vst [vmem:[%s221 + $0xc0] sm:$0xff] %v2409
      %2438 = vst [vmem:[%s221 + $0xc8] sm:$0xff] %v2410
      %2439 = vst [vmem:[%s221 + $0xd0] sm:$0xff] %v2411
      %2440 = vst [vmem:[%s221 + $0xd8] sm:$0xff] %v2412
      %p2441 = scmp.lt.s32.totalorder %s18, 1
      %s2442 = scalar_select %p2441, %s18, 1
      %p2443 = scmp.lt.s32.totalorder %s19, 0
      %s2444 = scalar_select %p2443, %s19, 0
      %s2445 = smul.addr %s2442, 28
      %s2446 = sadd.s32 %s2444, %s2445
      %s2447 = smul.addr %s2446, 8
      %s2448 = scalar_lea.vmem %s3, %s2447
      // Predicated region
      $region33: #{_forward_impl.1} parent=31 // pred_check
        %p2449 = pneg %p124
      $region34: #{_forward_impl.1} parent=31 // pred_check_branch
        %2451 = sbr.rel (%p2449) target = $region36
      $region35: #{_forward_impl.1} parent=31 // pred_region
        _
      $region36: #{_forward_impl.1} parent=31 // pred_fallthru
        _
    $region32: #{_forward_impl.1} parent=5 // pred_fallthru
      _
    %p2452 = scmp.le.s32.totalorder 2, %s9
    // Predicated region
    $region37: #{_forward_impl.1} parent=5 // pred_check
      %p2453 = pneg %p2452
    $region38: #{_forward_impl.1} parent=5 // pred_check_branch
      %2455 = sbr.rel (%p2453) target = $region40
    $region39: #{_forward_impl.1} parent=5 // pred_region
      %s2456 = ssub.s32 %s9, 2
      // Predicated region
      $region41: #{_forward_impl.1} parent=39 // pred_check
        %p2457 = pneg %p130
      $region42: #{_forward_impl.1} parent=39 // pred_check_branch
        %2459 = sbr.rel (%p2457) target = $region44
      $region43: #{_forward_impl.1} parent=39 // pred_region
        %p2460 = scmp.lt.s32.totalorder %s20, 1
        %s2461 = scalar_select %p2460, %s20, 1
        %p2462 = scmp.lt.s32.totalorder %s21, 0
        %s2463 = scalar_select %p2462, %s21, 0
        %s2464 = smul.addr %s2461, 28
        %s2465 = sadd.s32 %s2463, %s2464
        %s2466 = smul.addr %s2465, 8
        %s2467 = scalar_lea.vmem %s3, %s2466
      $region44: #{_forward_impl.1} parent=39 // pred_fallthru
        _
    $region40: #{_forward_impl.1} parent=5 // pred_fallthru
      _
  $region6: #{_forward_impl.1} parent=0 // loop_footer
    %s13 = sadd.s32 1, %s9
  $region7: #{_forward_impl.1} parent=0 // loop_footer_branch
    %8 = sbr.rel target = $region3
  $region8: #{_forward_impl.1} parent=0 // loop_exit
    _

</llo_original>
